<compile_context>
chip_gen: v7x
topology: tpu7x:2x2x1
jax: 0.10.0
libtpu: 0.0.40
codegen_flags: <defaults>
</compile_context>

<pallas_src>
import jax
import jax.numpy as jnp
from jax import lax
from jax.experimental import pallas as pl
from jax.experimental.pallas import tpu as pltpu


# ----------------------------------------------------------------------------
# Encoder kernel: single grid cell, unrolled GRU over src time steps.
# Emits encoder states [S, B, H] and the final hidden [B, H] (written once).
# ----------------------------------------------------------------------------
def encoder_kernel(x_ref, wx_ref, wh_ref, bih_ref, bhh_ref,
                   enc_out_ref, last_h_ref):
    S, B, _ = x_ref.shape
    H = wh_ref.shape[0]

    wx = wx_ref[...]          # (E, 3H) bf16
    wh = wh_ref[...]          # (H, 3H) bf16
    bih = bih_ref[...]        # (1, 3H) f32
    bhh = bhh_ref[...]        # (1, 3H) f32

    def step(t, h):
        x = x_ref[t]          # (B, E) bf16
        gi = jnp.dot(x, wx, preferred_element_type=jnp.float32) + bih
        gh = jnp.dot(h.astype(wh.dtype), wh, preferred_element_type=jnp.float32) + bhh
        r = jax.nn.sigmoid(gi[:, :H] + gh[:, :H])
        z = jax.nn.sigmoid(gi[:, H:2 * H] + gh[:, H:2 * H])
        n = jnp.tanh(gi[:, 2 * H:] + r * gh[:, 2 * H:])
        h_new = (1.0 - z) * n + z * h
        enc_out_ref[t] = h_new
        return h_new

    h0 = jnp.zeros((B, H), jnp.float32)
    h_last = lax.fori_loop(0, S, step, h0, unroll=True)
    last_h_ref[...] = h_last   # written once (not per step)


def run_encoder(src_emb, wx, wh, bih, bhh):
    S, B, E = src_emb.shape
    H = wh.shape[0]
    full = lambda shape: pl.BlockSpec(shape, lambda i: (0,) * len(shape))
    return pl.pallas_call(
        encoder_kernel,
        out_shape=(jax.ShapeDtypeStruct((S, B, H), jnp.float32),
                   jax.ShapeDtypeStruct((B, H), jnp.float32)),
        grid_spec=pltpu.PrefetchScalarGridSpec(
            num_scalar_prefetch=0, grid=(1,),
            in_specs=[full((S, B, E)),
                      full((E, 3 * H)), full((H, 3 * H)),
                      full((1, 3 * H)), full((1, 3 * H))],
            out_specs=(full((S, B, H)), full((B, H)))),
        compiler_params=pltpu.CompilerParams(
            dimension_semantics=("arbitrary",),
            vmem_limit_bytes=32 * 1024 * 1024),
    )(src_emb, wx, wh, bih, bhh)


# ----------------------------------------------------------------------------
# Decoder kernel: single grid cell; the whole decode loop (attention + GRU +
# output projection + argmax / teacher-forcing input selection) runs inside an
# unrolled fori_loop.  Hidden state and the current input embedding are loop
# carries; target tokens live in SMEM as int32.
# ----------------------------------------------------------------------------
def decoder_kernel(tf_ref, trg_ref, last_h_ref, enc_ref,
                   emb_ref, wa_h_ref, wa_e_ref, ba_ref, va_ref,
                   wx_e_ref, wx_w_ref, wh_ref, bih_ref, bhh_ref,
                   wo_h_ref, wo_w_ref, wo_e_ref, bo_ref,
                   out_ref):
    T, B, V = out_ref.shape
    S = enc_ref.shape[0]
    H = last_h_ref.shape[-1]

    # outputs[0] stays zero, exactly like the torch module
    out_ref[0] = jnp.zeros((B, V), jnp.float32)

    # ---- loop-invariant loads ----
    enc = enc_ref[...]                       # (S, B, H) f32
    emb = emb_ref[...]                       # (V, E) f32
    wa_h = wa_h_ref[...]                     # (H, H) bf16
    wa_e = wa_e_ref[...]                     # (H, H) bf16
    ba = ba_ref[...]                         # (1, H) f32
    va = va_ref[...]                         # (1, H) f32
    wx_e = wx_e_ref[...]                     # (E, 3H) bf16
    wx_w = wx_w_ref[...]                     # (H, 3H) bf16
    wh = wh_ref[...]                         # (H, 3H) bf16
    bih = bih_ref[...]                       # (1, 3H) f32
    bhh = bhh_ref[...]                       # (1, 3H) f32
    wo_h = wo_h_ref[...]                     # (H, V) bf16
    wo_w = wo_w_ref[...]                     # (H, V) bf16
    wo_e = wo_e_ref[...]                     # (E, V) bf16
    bo = bo_ref[...]                         # (1, V) f32

    # ---- hoisted encoder-side attention projection (computed once) ----
    enc2 = enc.reshape(S * B, H)
    enc_proj = (jnp.dot(enc2.astype(wa_e.dtype), wa_e,
                        preferred_element_type=jnp.float32) + ba).reshape(S, B, H)
    va_b = va[None, :, :]                    # (1, 1, H)

    def gather_rows(t):
        # embeddings of trg[t, :] via per-row dynamic slices (SMEM scalar indices)
        rows = [emb_ref[pl.ds(trg_ref[t, b], 1), :] for b in range(B)]
        return jnp.concatenate(rows, axis=0)          # (B, E) f32

    def step(t, carry):
        h, embedded = carry                  # h: (B, H) f32, embedded: (B, E) f32

        # --- Bahdanau attention (softmax over src positions) ---
        h_proj = jnp.dot(h.astype(wa_h.dtype), wa_h,
                         preferred_element_type=jnp.float32)          # (B, H)
        energy = jnp.tanh(enc_proj + h_proj[None, :, :])              # (S, B, H)
        scores = jnp.sum(energy * va_b, axis=-1, keepdims=True)       # (S, B, 1)
        m = jnp.max(scores, axis=0, keepdims=True)
        e = jnp.exp(scores - m)
        inv = pl.reciprocal(jnp.sum(e, axis=0, keepdims=True), approx=True)
        a = e * inv                                                    # (S, B, 1)
        weighted = jnp.sum(a * enc, axis=0)                            # (B, H) f32

        # --- GRU step on [embedded ; weighted] via split matmuls ---
        gi = (jnp.dot(embedded.astype(wx_e.dtype), wx_e,
                      preferred_element_type=jnp.float32)
              + jnp.dot(weighted.astype(wx_w.dtype), wx_w,
                        preferred_element_type=jnp.float32)
              + bih)
        gh = jnp.dot(h.astype(wh.dtype), wh, preferred_element_type=jnp.float32) + bhh
        r = jax.nn.sigmoid(gi[:, :H] + gh[:, :H])
        z = jax.nn.sigmoid(gi[:, H:2 * H] + gh[:, H:2 * H])
        n = jnp.tanh(gi[:, 2 * H:] + r * gh[:, 2 * H:])
        h_new = (1.0 - z) * n + z * h

        # --- output projection on [h_new ; weighted ; embedded] (split matmuls) ---
        pred = (jnp.dot(h_new.astype(wo_h.dtype), wo_h,
                        preferred_element_type=jnp.float32)
                + jnp.dot(weighted.astype(wo_w.dtype), wo_w,
                          preferred_element_type=jnp.float32)
                + jnp.dot(embedded.astype(wo_e.dtype), wo_e,
                          preferred_element_type=jnp.float32)
                + bo)                                                  # (B, V) f32
        out_ref[t] = pred

        # --- next input: teacher forcing (token from SMEM) vs argmax(pred) ---
        iota = lax.broadcasted_iota(jnp.int32, (B, V), 1)
        maxv = jnp.max(pred, axis=-1, keepdims=True)
        idx = jnp.min(jnp.where(pred == maxv, iota, V), axis=-1, keepdims=True)
        top1_oh = (iota == idx).astype(jnp.float32)                    # first-max one-hot
        # TODO(synk): at realistic vocab sizes replace this one-hot matmul with a
        #             row gather / DMA of the embedding at the argmax index.
        emb_pred = jnp.dot(top1_oh, emb, preferred_element_type=jnp.float32)
        emb_tf = gather_rows(t)                                        # (B, E)
        tf = tf_ref[t - 1]
        embedded_next = jnp.where(tf > 0, emb_tf, emb_pred)
        return h_new, embedded_next

    h0 = last_h_ref[...]
    emb0 = gather_rows(0)                    # input = trg[0, :]
    lax.fori_loop(1, T, step, (h0, emb0), unroll=True)


def run_decoder(tf_mask, trg, last_h, enc, emb,
                wa_h, wa_e, ba, va, wx_e, wx_w, wh, bih, bhh,
                wo_h, wo_w, wo_e, bo):
    T, B = trg.shape
    S = enc.shape[0]
    H = wh.shape[0]
    E = emb.shape[1]
    V = emb.shape[0]
    full = lambda shape: pl.BlockSpec(shape, lambda i: (0,) * len(shape))
    smem = pl.BlockSpec(memory_space=pltpu.SMEM)
    return pl.pallas_call(
        decoder_kernel,
        out_shape=jax.ShapeDtypeStruct((T, B, V), jnp.float32),
        grid_spec=pltpu.PrefetchScalarGridSpec(
            num_scalar_prefetch=0, grid=(1,),
            in_specs=[
                smem,                                    # tf_mask (T-1,) int32
                smem,                                    # trg (T, B) int32
                full((B, H)),                            # encoder last hidden
                full((S, B, H)),                         # encoder outputs
                full((V, E)),                            # decoder embedding (f32, gathered)
                full((H, H)), full((H, H)),              # attention Wa (hidden / enc halves)
                full((1, H)), full((1, H)),              # attention bias, v
                full((E, 3 * H)), full((H, 3 * H)),      # GRU W_ih split (emb / weighted)
                full((H, 3 * H)),                        # GRU W_hh
                full((1, 3 * H)), full((1, 3 * H)),      # GRU biases
                full((H, V)), full((H, V)), full((E, V)),  # out proj split (h/weighted/emb)
                full((1, V)),                            # out bias
            ],
            out_specs=full((T, B, V))),
        compiler_params=pltpu.CompilerParams(
            dimension_semantics=("arbitrary",),
            vmem_limit_bytes=32 * 1024 * 1024),
    )(tf_mask, trg, last_h, enc, emb, wa_h, wa_e, ba, va,
      wx_e, wx_w, wh, bih, bhh, wo_h, wo_w, wo_e, bo)


# ----------------------------------------------------------------------------
def seq2seq_forward(src, trg, params, tf_mask):
    S, B0 = src.shape
    T = trg.shape[0]
    H = params["enc_wh"].shape[0]
    E = params["dec_emb"].shape[1]
    bf16 = jnp.bfloat16

    # pad batch to a multiple of 8 (sublane width); padded rows are dropped at the end
    B = max(8, ((B0 + 7) // 8) * 8)
    if B != B0:
        pad = ((0, 0), (0, B - B0))
        src = jnp.pad(src, pad)
        trg = jnp.pad(trg, pad)

    # encoder embedding lookup (glue), embeddings/weights in bf16
    src_emb = jnp.take(params["enc_emb"].astype(bf16), src, axis=0)     # (S, B, E)
    enc_out, last_h = run_encoder(src_emb,
                                  params["enc_wx"].astype(bf16),
                                  params["enc_wh"].astype(bf16),
                                  params["enc_bih"], params["enc_bhh"])

    wa = params["attn_w"]          # (2H, H): rows [0:H] -> hidden, [H:2H] -> enc
    wx = params["dec_wx"]          # (E+H, 3H): rows [0:E] -> embedded, [E:] -> weighted
    wo = params["out_w"]           # (2H+E, V): rows [0:H]->h, [H:2H]->weighted, [2H:]->emb
    outputs = run_decoder(
        tf_mask, trg, last_h, enc_out,
        params["dec_emb"],                      # kept f32 for per-row dynamic-slice gathers
        wa[:H].astype(bf16), wa[H:].astype(bf16),
        params["attn_b"], params["attn_v"],
        wx[:E].astype(bf16), wx[E:].astype(bf16),
        params["dec_wh"].astype(bf16),
        params["dec_bih"], params["dec_bhh"],
        wo[:H].astype(bf16), wo[H:2 * H].astype(bf16), wo[2 * H:].astype(bf16),
        params["out_b"])
    return outputs[:, :B0, :]                   # (T, B0, V)


def init_params(key, V, E, H):
    ks = jax.random.split(key, 14)
    s = 0.1
    return {
        "enc_emb": s * jax.random.normal(ks[0], (V, E), jnp.float32),
        "enc_wx":  s * jax.random.normal(ks[1], (E, 3 * H), jnp.float32),
        "enc_wh":  s * jax.random.normal(ks[2], (H, 3 * H), jnp.float32),
        "enc_bih": s * jax.random.normal(ks[3], (1, 3 * H), jnp.float32),
        "enc_bhh": s * jax.random.normal(ks[4], (1, 3 * H), jnp.float32),
        "dec_emb": s * jax.random.normal(ks[5], (V, E), jnp.float32),
        "attn_w":  s * jax.random.normal(ks[6], (2 * H, H), jnp.float32),
        "attn_b":  s * jax.random.normal(ks[7], (1, H), jnp.float32),
        "attn_v":  s * jax.random.normal(ks[8], (1, H), jnp.float32),
        "dec_wx":  s * jax.random.normal(ks[9], (E + H, 3 * H), jnp.float32),
        "dec_wh":  s * jax.random.normal(ks[10], (H, 3 * H), jnp.float32),
        "dec_bih": s * jax.random.normal(ks[11], (1, 3 * H), jnp.float32),
        "dec_bhh": s * jax.random.normal(ks[12], (1, 3 * H), jnp.float32),
        "out_w":   s * jax.random.normal(ks[13], (2 * H + E, V), jnp.float32),
        "out_b":   jnp.zeros((1, V), jnp.float32),
    }


if __name__ == "__main__":
    S, T, B = 8, 8, 2          # src_len, trg_len, batch
    V, E, H = 32, 16, 32       # vocab, embedding, hidden
    teacher_forcing_ratio = 0.5

    key = jax.random.PRNGKey(0)
    kp, ks, kt, kf = jax.random.split(key, 4)
    params = init_params(kp, V, E, H)
    src = jax.random.randint(ks, (S, B), 0, V, dtype=jnp.int32)
    trg = jax.random.randint(kt, (T, B), 0, V, dtype=jnp.int32)
    # deterministic teacher-forcing coin flips (one per decode step t = 1..T-1)
    tf_mask = (jax.random.uniform(kf, (T - 1,)) < teacher_forcing_ratio).astype(jnp.int32)

    outputs = seq2seq_forward(src, trg, params, tf_mask)
    jax.block_until_ready(outputs)
    assert outputs.shape == (T, B, V)
    assert bool(jnp.all(outputs[0] == 0.0))
    assert bool(jnp.all(jnp.isfinite(outputs)))
    print("KERNEL_OK")
</pallas_src>

<mosaic_0001>
module attributes {stable_mosaic.version = 11 : i64} {
  func.func @encoder_kernel(%arg0: i32, %arg1: memref<8x8x16xbf16, #tpu.memory_space<vmem>>, %arg2: memref<16x96xbf16, #tpu.memory_space<vmem>>, %arg3: memref<32x96xbf16, #tpu.memory_space<vmem>>, %arg4: memref<1x96xf32, #tpu.memory_space<vmem>>, %arg5: memref<1x96xf32, #tpu.memory_space<vmem>>, %arg6: memref<8x8x32xf32, #tpu.memory_space<vmem>>, %arg7: memref<8x32xf32, #tpu.memory_space<vmem>>) attributes {dimension_semantics = [#tpu.dimension_semantics<arbitrary>], iteration_bounds = array<i64: 1>, scalar_prefetch = 0 : i64, scratch_operands = 0 : i64, tpu.core_type = #tpu.core_type<tc>, window_params = [{pipeline_mode = #tpu.pipeline_mode<synchronous>, transform_indices = @transform_0, window_bounds = array<i64: 8, 8, 16>}, {pipeline_mode = #tpu.pipeline_mode<synchronous>, transform_indices = @transform_1, window_bounds = array<i64: 16, 96>}, {pipeline_mode = #tpu.pipeline_mode<synchronous>, transform_indices = @transform_2, window_bounds = array<i64: 32, 96>}, {pipeline_mode = #tpu.pipeline_mode<synchronous>, transform_indices = @transform_3, window_bounds = array<i64: 1, 96>}, {pipeline_mode = #tpu.pipeline_mode<synchronous>, transform_indices = @transform_4, window_bounds = array<i64: 1, 96>}, {pipeline_mode = #tpu.pipeline_mode<synchronous>, transform_indices = @transform_5, window_bounds = array<i64: 8, 8, 32>}, {pipeline_mode = #tpu.pipeline_mode<synchronous>, transform_indices = @transform_6, window_bounds = array<i64: 8, 32>}]} {
    %c0 = arith.constant 0 : index
    %c0_0 = arith.constant 0 : index
    %0 = vector.load %arg2[%c0, %c0_0] : memref<16x96xbf16, #tpu.memory_space<vmem>>, vector<16x96xbf16>
    %c0_1 = arith.constant 0 : index
    %c0_2 = arith.constant 0 : index
    %1 = vector.load %arg3[%c0_1, %c0_2] : memref<32x96xbf16, #tpu.memory_space<vmem>>, vector<32x96xbf16>
    %c0_3 = arith.constant 0 : index
    %c0_4 = arith.constant 0 : index
    %2 = vector.load %arg4[%c0_3, %c0_4] : memref<1x96xf32, #tpu.memory_space<vmem>>, vector<1x96xf32>
    %c0_5 = arith.constant 0 : index
    %c0_6 = arith.constant 0 : index
    %3 = vector.load %arg5[%c0_5, %c0_6] : memref<1x96xf32, #tpu.memory_space<vmem>>, vector<1x96xf32>
    %cst = arith.constant 0.000000e+00 : f32
    %4 = vector.broadcast %cst : f32 to vector<8x32xf32>
    %c0_i32 = arith.constant 0 : i32
    %5 = arith.index_cast %c0_i32 : i32 to index
    %c0_7 = arith.constant 0 : index
    %c0_8 = arith.constant 0 : index
    %6 = vector.load %arg1[%5, %c0_7, %c0_8] : memref<8x8x16xbf16, #tpu.memory_space<vmem>>, vector<1x8x16xbf16>
    %7 = vector.shape_cast %6 : vector<1x8x16xbf16> to vector<8x16xbf16>
    %cst_9 = arith.constant dense<0.000000e+00> : vector<8x96xf32>
    %8 = tpu.matmul %7, %0, %cst_9 {dimension_numbers = #tpu.dot_dimension_numbers<[1], [0], [0], [1], [0, 0, 1, 1], [], []>} : vector<8x16xbf16>, vector<16x96xbf16>, vector<8x96xf32> -> vector<8x96xf32>
    %9 = vector.broadcast %2 : vector<1x96xf32> to vector<8x96xf32>
    %10 = arith.addf %8, %9 : vector<8x96xf32>
    %11 = arith.truncf %4 : vector<8x32xf32> to vector<8x32xbf16>
    %cst_10 = arith.constant dense<0.000000e+00> : vector<8x96xf32>
    %12 = tpu.matmul %11, %1, %cst_10 {dimension_numbers = #tpu.dot_dimension_numbers<[1], [0], [0], [1], [0, 0, 1, 1], [], []>} : vector<8x32xbf16>, vector<32x96xbf16>, vector<8x96xf32> -> vector<8x96xf32>
    %13 = vector.broadcast %3 : vector<1x96xf32> to vector<8x96xf32>
    %14 = arith.addf %12, %13 : vector<8x96xf32>
    %15 = vector.extract_strided_slice %10 {offsets = [0, 0], sizes = [8, 32], strides = [1, 1]} : vector<8x96xf32> to vector<8x32xf32>
    %16 = vector.extract_strided_slice %14 {offsets = [0, 0], sizes = [8, 32], strides = [1, 1]} : vector<8x96xf32> to vector<8x32xf32>
    %17 = arith.addf %15, %16 : vector<8x32xf32>
    %18 = arith.negf %17 : vector<8x32xf32>
    %19 = math.exp %18 : vector<8x32xf32>
    %cst_11 = arith.constant 1.000000e+00 : f32
    %20 = vector.broadcast %cst_11 : f32 to vector<8x32xf32>
    %21 = arith.addf %20, %19 : vector<8x32xf32>
    %22 = arith.divf %20, %21 : vector<8x32xf32>
    %23 = vector.extract_strided_slice %10 {offsets = [0, 32], sizes = [8, 32], strides = [1, 1]} : vector<8x96xf32> to vector<8x32xf32>
    %24 = vector.extract_strided_slice %14 {offsets = [0, 32], sizes = [8, 32], strides = [1, 1]} : vector<8x96xf32> to vector<8x32xf32>
    %25 = arith.addf %23, %24 : vector<8x32xf32>
    %26 = arith.negf %25 : vector<8x32xf32>
    %27 = math.exp %26 : vector<8x32xf32>
    %cst_12 = arith.constant 1.000000e+00 : f32
    %28 = vector.broadcast %cst_12 : f32 to vector<8x32xf32>
    %29 = arith.addf %28, %27 : vector<8x32xf32>
    %30 = arith.divf %28, %29 : vector<8x32xf32>
    %31 = vector.extract_strided_slice %10 {offsets = [0, 64], sizes = [8, 32], strides = [1, 1]} : vector<8x96xf32> to vector<8x32xf32>
    %32 = vector.extract_strided_slice %14 {offsets = [0, 64], sizes = [8, 32], strides = [1, 1]} : vector<8x96xf32> to vector<8x32xf32>
    %33 = arith.mulf %22, %32 : vector<8x32xf32>
    %34 = arith.addf %31, %33 : vector<8x32xf32>
    %35 = math.tanh %34 : vector<8x32xf32>
    %cst_13 = arith.constant 1.000000e+00 : f32
    %36 = vector.broadcast %cst_13 : f32 to vector<8x32xf32>
    %37 = arith.subf %36, %30 : vector<8x32xf32>
    %38 = arith.mulf %37, %35 : vector<8x32xf32>
    %39 = arith.mulf %30, %4 : vector<8x32xf32>
    %40 = arith.addf %38, %39 : vector<8x32xf32>
    %41 = arith.index_cast %c0_i32 : i32 to index
    %c0_14 = arith.constant 0 : index
    %c0_15 = arith.constant 0 : index
    %42 = vector.load %arg6[%41, %c0_14, %c0_15] : memref<8x8x32xf32, #tpu.memory_space<vmem>>, vector<1x8x32xf32>
    %43 = vector.shape_cast %42 : vector<1x8x32xf32> to vector<8x32xf32>
    %44 = vector.shape_cast %40 : vector<8x32xf32> to vector<1x8x32xf32>
    tpu.vector_store %arg6[%41, %c0_14, %c0_15], %44 {strides = array<i32>} : memref<8x8x32xf32, #tpu.memory_space<vmem>>, vector<1x8x32xf32>,
    %c1_i32 = arith.constant 1 : i32
    %45 = arith.index_cast %c1_i32 : i32 to index
    %c0_16 = arith.constant 0 : index
    %c0_17 = arith.constant 0 : index
    %46 = vector.load %arg1[%45, %c0_16, %c0_17] : memref<8x8x16xbf16, #tpu.memory_space<vmem>>, vector<1x8x16xbf16>
    %47 = vector.shape_cast %46 : vector<1x8x16xbf16> to vector<8x16xbf16>
    %cst_18 = arith.constant dense<0.000000e+00> : vector<8x96xf32>
    %48 = tpu.matmul %47, %0, %cst_18 {dimension_numbers = #tpu.dot_dimension_numbers<[1], [0], [0], [1], [0, 0, 1, 1], [], []>} : vector<8x16xbf16>, vector<16x96xbf16>, vector<8x96xf32> -> vector<8x96xf32>
    %49 = vector.broadcast %2 : vector<1x96xf32> to vector<8x96xf32>
    %50 = arith.addf %48, %49 : vector<8x96xf32>
    %51 = arith.truncf %40 : vector<8x32xf32> to vector<8x32xbf16>
    %cst_19 = arith.constant dense<0.000000e+00> : vector<8x96xf32>
    %52 = tpu.matmul %51, %1, %cst_19 {dimension_numbers = #tpu.dot_dimension_numbers<[1], [0], [0], [1], [0, 0, 1, 1], [], []>} : vector<8x32xbf16>, vector<32x96xbf16>, vector<8x96xf32> -> vector<8x96xf32>
    %53 = vector.broadcast %3 : vector<1x96xf32> to vector<8x96xf32>
    %54 = arith.addf %52, %53 : vector<8x96xf32>
    %55 = vector.extract_strided_slice %50 {offsets = [0, 0], sizes = [8, 32], strides = [1, 1]} : vector<8x96xf32> to vector<8x32xf32>
    %56 = vector.extract_strided_slice %54 {offsets = [0, 0], sizes = [8, 32], strides = [1, 1]} : vector<8x96xf32> to vector<8x32xf32>
    %57 = arith.addf %55, %56 : vector<8x32xf32>
    %58 = arith.negf %57 : vector<8x32xf32>
    %59 = math.exp %58 : vector<8x32xf32>
    %cst_20 = arith.constant 1.000000e+00 : f32
    %60 = vector.broadcast %cst_20 : f32 to vector<8x32xf32>
    %61 = arith.addf %60, %59 : vector<8x32xf32>
    %62 = arith.divf %60, %61 : vector<8x32xf32>
    %63 = vector.extract_strided_slice %50 {offsets = [0, 32], sizes = [8, 32], strides = [1, 1]} : vector<8x96xf32> to vector<8x32xf32>
    %64 = vector.extract_strided_slice %54 {offsets = [0, 32], sizes = [8, 32], strides = [1, 1]} : vector<8x96xf32> to vector<8x32xf32>
    %65 = arith.addf %63, %64 : vector<8x32xf32>
    %66 = arith.negf %65 : vector<8x32xf32>
    %67 = math.exp %66 : vector<8x32xf32>
    %cst_21 = arith.constant 1.000000e+00 : f32
    %68 = vector.broadcast %cst_21 : f32 to vector<8x32xf32>
    %69 = arith.addf %68, %67 : vector<8x32xf32>
    %70 = arith.divf %68, %69 : vector<8x32xf32>
    %71 = vector.extract_strided_slice %50 {offsets = [0, 64], sizes = [8, 32], strides = [1, 1]} : vector<8x96xf32> to vector<8x32xf32>
    %72 = vector.extract_strided_slice %54 {offsets = [0, 64], sizes = [8, 32], strides = [1, 1]} : vector<8x96xf32> to vector<8x32xf32>
    %73 = arith.mulf %62, %72 : vector<8x32xf32>
    %74 = arith.addf %71, %73 : vector<8x32xf32>
    %75 = math.tanh %74 : vector<8x32xf32>
    %cst_22 = arith.constant 1.000000e+00 : f32
    %76 = vector.broadcast %cst_22 : f32 to vector<8x32xf32>
    %77 = arith.subf %76, %70 : vector<8x32xf32>
    %78 = arith.mulf %77, %75 : vector<8x32xf32>
    %79 = arith.mulf %70, %40 : vector<8x32xf32>
    %80 = arith.addf %78, %79 : vector<8x32xf32>
    %81 = arith.index_cast %c1_i32 : i32 to index
    %c0_23 = arith.constant 0 : index
    %c0_24 = arith.constant 0 : index
    %82 = vector.load %arg6[%81, %c0_23, %c0_24] : memref<8x8x32xf32, #tpu.memory_space<vmem>>, vector<1x8x32xf32>
    %83 = vector.shape_cast %82 : vector<1x8x32xf32> to vector<8x32xf32>
    %84 = vector.shape_cast %80 : vector<8x32xf32> to vector<1x8x32xf32>
    tpu.vector_store %arg6[%81, %c0_23, %c0_24], %84 {strides = array<i32>} : memref<8x8x32xf32, #tpu.memory_space<vmem>>, vector<1x8x32xf32>,
    %c2_i32 = arith.constant 2 : i32
    %85 = arith.index_cast %c2_i32 : i32 to index
    %c0_25 = arith.constant 0 : index
    %c0_26 = arith.constant 0 : index
    %86 = vector.load %arg1[%85, %c0_25, %c0_26] : memref<8x8x16xbf16, #tpu.memory_space<vmem>>, vector<1x8x16xbf16>
    %87 = vector.shape_cast %86 : vector<1x8x16xbf16> to vector<8x16xbf16>
    %cst_27 = arith.constant dense<0.000000e+00> : vector<8x96xf32>
    %88 = tpu.matmul %87, %0, %cst_27 {dimension_numbers = #tpu.dot_dimension_numbers<[1], [0], [0], [1], [0, 0, 1, 1], [], []>} : vector<8x16xbf16>, vector<16x96xbf16>, vector<8x96xf32> -> vector<8x96xf32>
    %89 = vector.broadcast %2 : vector<1x96xf32> to vector<8x96xf32>
    %90 = arith.addf %88, %89 : vector<8x96xf32>
    %91 = arith.truncf %80 : vector<8x32xf32> to vector<8x32xbf16>
    %cst_28 = arith.constant dense<0.000000e+00> : vector<8x96xf32>
    %92 = tpu.matmul %91, %1, %cst_28 {dimension_numbers = #tpu.dot_dimension_numbers<[1], [0], [0], [1], [0, 0, 1, 1], [], []>} : vector<8x32xbf16>, vector<32x96xbf16>, vector<8x96xf32> -> vector<8x96xf32>
    %93 = vector.broadcast %3 : vector<1x96xf32> to vector<8x96xf32>
    %94 = arith.addf %92, %93 : vector<8x96xf32>
    %95 = vector.extract_strided_slice %90 {offsets = [0, 0], sizes = [8, 32], strides = [1, 1]} : vector<8x96xf32> to vector<8x32xf32>
    %96 = vector.extract_strided_slice %94 {offsets = [0, 0], sizes = [8, 32], strides = [1, 1]} : vector<8x96xf32> to vector<8x32xf32>
    %97 = arith.addf %95, %96 : vector<8x32xf32>
    %98 = arith.negf %97 : vector<8x32xf32>
    %99 = math.exp %98 : vector<8x32xf32>
    %cst_29 = arith.constant 1.000000e+00 : f32
    %100 = vector.broadcast %cst_29 : f32 to vector<8x32xf32>
    %101 = arith.addf %100, %99 : vector<8x32xf32>
    %102 = arith.divf %100, %101 : vector<8x32xf32>
    %103 = vector.extract_strided_slice %90 {offsets = [0, 32], sizes = [8, 32], strides = [1, 1]} : vector<8x96xf32> to vector<8x32xf32>
    %104 = vector.extract_strided_slice %94 {offsets = [0, 32], sizes = [8, 32], strides = [1, 1]} : vector<8x96xf32> to vector<8x32xf32>
    %105 = arith.addf %103, %104 : vector<8x32xf32>
    %106 = arith.negf %105 : vector<8x32xf32>
    %107 = math.exp %106 : vector<8x32xf32>
    %cst_30 = arith.constant 1.000000e+00 : f32
    %108 = vector.broadcast %cst_30 : f32 to vector<8x32xf32>
    %109 = arith.addf %108, %107 : vector<8x32xf32>
    %110 = arith.divf %108, %109 : vector<8x32xf32>
    %111 = vector.extract_strided_slice %90 {offsets = [0, 64], sizes = [8, 32], strides = [1, 1]} : vector<8x96xf32> to vector<8x32xf32>
    %112 = vector.extract_strided_slice %94 {offsets = [0, 64], sizes = [8, 32], strides = [1, 1]} : vector<8x96xf32> to vector<8x32xf32>
    %113 = arith.mulf %102, %112 : vector<8x32xf32>
    %114 = arith.addf %111, %113 : vector<8x32xf32>
    %115 = math.tanh %114 : vector<8x32xf32>
    %cst_31 = arith.constant 1.000000e+00 : f32
    %116 = vector.broadcast %cst_31 : f32 to vector<8x32xf32>
    %117 = arith.subf %116, %110 : vector<8x32xf32>
    %118 = arith.mulf %117, %115 : vector<8x32xf32>
    %119 = arith.mulf %110, %80 : vector<8x32xf32>
    %120 = arith.addf %118, %119 : vector<8x32xf32>
    %121 = arith.index_cast %c2_i32 : i32 to index
    %c0_32 = arith.constant 0 : index
    %c0_33 = arith.constant 0 : index
    %122 = vector.load %arg6[%121, %c0_32, %c0_33] : memref<8x8x32xf32, #tpu.memory_space<vmem>>, vector<1x8x32xf32>
    %123 = vector.shape_cast %122 : vector<1x8x32xf32> to vector<8x32xf32>
    %124 = vector.shape_cast %120 : vector<8x32xf32> to vector<1x8x32xf32>
    tpu.vector_store %arg6[%121, %c0_32, %c0_33], %124 {strides = array<i32>} : memref<8x8x32xf32, #tpu.memory_space<vmem>>, vector<1x8x32xf32>,
    %c3_i32 = arith.constant 3 : i32
    %125 = arith.index_cast %c3_i32 : i32 to index
    %c0_34 = arith.constant 0 : index
    %c0_35 = arith.constant 0 : index
    %126 = vector.load %arg1[%125, %c0_34, %c0_35] : memref<8x8x16xbf16, #tpu.memory_space<vmem>>, vector<1x8x16xbf16>
    %127 = vector.shape_cast %126 : vector<1x8x16xbf16> to vector<8x16xbf16>
    %cst_36 = arith.constant dense<0.000000e+00> : vector<8x96xf32>
    %128 = tpu.matmul %127, %0, %cst_36 {dimension_numbers = #tpu.dot_dimension_numbers<[1], [0], [0], [1], [0, 0, 1, 1], [], []>} : vector<8x16xbf16>, vector<16x96xbf16>, vector<8x96xf32> -> vector<8x96xf32>
    %129 = vector.broadcast %2 : vector<1x96xf32> to vector<8x96xf32>
    %130 = arith.addf %128, %129 : vector<8x96xf32>
    %131 = arith.truncf %120 : vector<8x32xf32> to vector<8x32xbf16>
    %cst_37 = arith.constant dense<0.000000e+00> : vector<8x96xf32>
    %132 = tpu.matmul %131, %1, %cst_37 {dimension_numbers = #tpu.dot_dimension_numbers<[1], [0], [0], [1], [0, 0, 1, 1], [], []>} : vector<8x32xbf16>, vector<32x96xbf16>, vector<8x96xf32> -> vector<8x96xf32>
    %133 = vector.broadcast %3 : vector<1x96xf32> to vector<8x96xf32>
    %134 = arith.addf %132, %133 : vector<8x96xf32>
    %135 = vector.extract_strided_slice %130 {offsets = [0, 0], sizes = [8, 32], strides = [1, 1]} : vector<8x96xf32> to vector<8x32xf32>
    %136 = vector.extract_strided_slice %134 {offsets = [0, 0], sizes = [8, 32], strides = [1, 1]} : vector<8x96xf32> to vector<8x32xf32>
    %137 = arith.addf %135, %136 : vector<8x32xf32>
    %138 = arith.negf %137 : vector<8x32xf32>
    %139 = math.exp %138 : vector<8x32xf32>
    %cst_38 = arith.constant 1.000000e+00 : f32
    %140 = vector.broadcast %cst_38 : f32 to vector<8x32xf32>
    %141 = arith.addf %140, %139 : vector<8x32xf32>
    %142 = arith.divf %140, %141 : vector<8x32xf32>
    %143 = vector.extract_strided_slice %130 {offsets = [0, 32], sizes = [8, 32], strides = [1, 1]} : vector<8x96xf32> to vector<8x32xf32>
    %144 = vector.extract_strided_slice %134 {offsets = [0, 32], sizes = [8, 32], strides = [1, 1]} : vector<8x96xf32> to vector<8x32xf32>
    %145 = arith.addf %143, %144 : vector<8x32xf32>
    %146 = arith.negf %145 : vector<8x32xf32>
    %147 = math.exp %146 : vector<8x32xf32>
    %cst_39 = arith.constant 1.000000e+00 : f32
    %148 = vector.broadcast %cst_39 : f32 to vector<8x32xf32>
    %149 = arith.addf %148, %147 : vector<8x32xf32>
    %150 = arith.divf %148, %149 : vector<8x32xf32>
    %151 = vector.extract_strided_slice %130 {offsets = [0, 64], sizes = [8, 32], strides = [1, 1]} : vector<8x96xf32> to vector<8x32xf32>
    %152 = vector.extract_strided_slice %134 {offsets = [0, 64], sizes = [8, 32], strides = [1, 1]} : vector<8x96xf32> to vector<8x32xf32>
    %153 = arith.mulf %142, %152 : vector<8x32xf32>
    %154 = arith.addf %151, %153 : vector<8x32xf32>
    %155 = math.tanh %154 : vector<8x32xf32>
    %cst_40 = arith.constant 1.000000e+00 : f32
    %156 = vector.broadcast %cst_40 : f32 to vector<8x32xf32>
    %157 = arith.subf %156, %150 : vector<8x32xf32>
    %158 = arith.mulf %157, %155 : vector<8x32xf32>
    %159 = arith.mulf %150, %120 : vector<8x32xf32>
    %160 = arith.addf %158, %159 : vector<8x32xf32>
    %161 = arith.index_cast %c3_i32 : i32 to index
    %c0_41 = arith.constant 0 : index
    %c0_42 = arith.constant 0 : index
    %162 = vector.load %arg6[%161, %c0_41, %c0_42] : memref<8x8x32xf32, #tpu.memory_space<vmem>>, vector<1x8x32xf32>
    %163 = vector.shape_cast %162 : vector<1x8x32xf32> to vector<8x32xf32>
    %164 = vector.shape_cast %160 : vector<8x32xf32> to vector<1x8x32xf32>
    tpu.vector_store %arg6[%161, %c0_41, %c0_42], %164 {strides = array<i32>} : memref<8x8x32xf32, #tpu.memory_space<vmem>>, vector<1x8x32xf32>,
    %c4_i32 = arith.constant 4 : i32
    %165 = arith.index_cast %c4_i32 : i32 to index
    %c0_43 = arith.constant 0 : index
    %c0_44 = arith.constant 0 : index
    %166 = vector.load %arg1[%165, %c0_43, %c0_44] : memref<8x8x16xbf16, #tpu.memory_space<vmem>>, vector<1x8x16xbf16>
    %167 = vector.shape_cast %166 : vector<1x8x16xbf16> to vector<8x16xbf16>
    %cst_45 = arith.constant dense<0.000000e+00> : vector<8x96xf32>
    %168 = tpu.matmul %167, %0, %cst_45 {dimension_numbers = #tpu.dot_dimension_numbers<[1], [0], [0], [1], [0, 0, 1, 1], [], []>} : vector<8x16xbf16>, vector<16x96xbf16>, vector<8x96xf32> -> vector<8x96xf32>
    %169 = vector.broadcast %2 : vector<1x96xf32> to vector<8x96xf32>
    %170 = arith.addf %168, %169 : vector<8x96xf32>
    %171 = arith.truncf %160 : vector<8x32xf32> to vector<8x32xbf16>
    %cst_46 = arith.constant dense<0.000000e+00> : vector<8x96xf32>
    %172 = tpu.matmul %171, %1, %cst_46 {dimension_numbers = #tpu.dot_dimension_numbers<[1], [0], [0], [1], [0, 0, 1, 1], [], []>} : vector<8x32xbf16>, vector<32x96xbf16>, vector<8x96xf32> -> vector<8x96xf32>
    %173 = vector.broadcast %3 : vector<1x96xf32> to vector<8x96xf32>
    %174 = arith.addf %172, %173 : vector<8x96xf32>
    %175 = vector.extract_strided_slice %170 {offsets = [0, 0], sizes = [8, 32], strides = [1, 1]} : vector<8x96xf32> to vector<8x32xf32>
    %176 = vector.extract_strided_slice %174 {offsets = [0, 0], sizes = [8, 32], strides = [1, 1]} : vector<8x96xf32> to vector<8x32xf32>
    %177 = arith.addf %175, %176 : vector<8x32xf32>
    %178 = arith.negf %177 : vector<8x32xf32>
    %179 = math.exp %178 : vector<8x32xf32>
    %cst_47 = arith.constant 1.000000e+00 : f32
    %180 = vector.broadcast %cst_47 : f32 to vector<8x32xf32>
    %181 = arith.addf %180, %179 : vector<8x32xf32>
    %182 = arith.divf %180, %181 : vector<8x32xf32>
    %183 = vector.extract_strided_slice %170 {offsets = [0, 32], sizes = [8, 32], strides = [1, 1]} : vector<8x96xf32> to vector<8x32xf32>
    %184 = vector.extract_strided_slice %174 {offsets = [0, 32], sizes = [8, 32], strides = [1, 1]} : vector<8x96xf32> to vector<8x32xf32>
    %185 = arith.addf %183, %184 : vector<8x32xf32>
    %186 = arith.negf %185 : vector<8x32xf32>
    %187 = math.exp %186 : vector<8x32xf32>
    %cst_48 = arith.constant 1.000000e+00 : f32
    %188 = vector.broadcast %cst_48 : f32 to vector<8x32xf32>
    %189 = arith.addf %188, %187 : vector<8x32xf32>
    %190 = arith.divf %188, %189 : vector<8x32xf32>
    %191 = vector.extract_strided_slice %170 {offsets = [0, 64], sizes = [8, 32], strides = [1, 1]} : vector<8x96xf32> to vector<8x32xf32>
    %192 = vector.extract_strided_slice %174 {offsets = [0, 64], sizes = [8, 32], strides = [1, 1]} : vector<8x96xf32> to vector<8x32xf32>
    %193 = arith.mulf %182, %192 : vector<8x32xf32>
    %194 = arith.addf %191, %193 : vector<8x32xf32>
    %195 = math.tanh %194 : vector<8x32xf32>
    %cst_49 = arith.constant 1.000000e+00 : f32
    %196 = vector.broadcast %cst_49 : f32 to vector<8x32xf32>
    %197 = arith.subf %196, %190 : vector<8x32xf32>
    %198 = arith.mulf %197, %195 : vector<8x32xf32>
    %199 = arith.mulf %190, %160 : vector<8x32xf32>
    %200 = arith.addf %198, %199 : vector<8x32xf32>
    %201 = arith.index_cast %c4_i32 : i32 to index
    %c0_50 = arith.constant 0 : index
    %c0_51 = arith.constant 0 : index
    %202 = vector.load %arg6[%201, %c0_50, %c0_51] : memref<8x8x32xf32, #tpu.memory_space<vmem>>, vector<1x8x32xf32>
    %203 = vector.shape_cast %202 : vector<1x8x32xf32> to vector<8x32xf32>
    %204 = vector.shape_cast %200 : vector<8x32xf32> to vector<1x8x32xf32>
    tpu.vector_store %arg6[%201, %c0_50, %c0_51], %204 {strides = array<i32>} : memref<8x8x32xf32, #tpu.memory_space<vmem>>, vector<1x8x32xf32>,
    %c5_i32 = arith.constant 5 : i32
    %205 = arith.index_cast %c5_i32 : i32 to index
    %c0_52 = arith.constant 0 : index
    %c0_53 = arith.constant 0 : index
    %206 = vector.load %arg1[%205, %c0_52, %c0_53] : memref<8x8x16xbf16, #tpu.memory_space<vmem>>, vector<1x8x16xbf16>
    %207 = vector.shape_cast %206 : vector<1x8x16xbf16> to vector<8x16xbf16>
    %cst_54 = arith.constant dense<0.000000e+00> : vector<8x96xf32>
    %208 = tpu.matmul %207, %0, %cst_54 {dimension_numbers = #tpu.dot_dimension_numbers<[1], [0], [0], [1], [0, 0, 1, 1], [], []>} : vector<8x16xbf16>, vector<16x96xbf16>, vector<8x96xf32> -> vector<8x96xf32>
    %209 = vector.broadcast %2 : vector<1x96xf32> to vector<8x96xf32>
    %210 = arith.addf %208, %209 : vector<8x96xf32>
    %211 = arith.truncf %200 : vector<8x32xf32> to vector<8x32xbf16>
    %cst_55 = arith.constant dense<0.000000e+00> : vector<8x96xf32>
    %212 = tpu.matmul %211, %1, %cst_55 {dimension_numbers = #tpu.dot_dimension_numbers<[1], [0], [0], [1], [0, 0, 1, 1], [], []>} : vector<8x32xbf16>, vector<32x96xbf16>, vector<8x96xf32> -> vector<8x96xf32>
    %213 = vector.broadcast %3 : vector<1x96xf32> to vector<8x96xf32>
    %214 = arith.addf %212, %213 : vector<8x96xf32>
    %215 = vector.extract_strided_slice %210 {offsets = [0, 0], sizes = [8, 32], strides = [1, 1]} : vector<8x96xf32> to vector<8x32xf32>
    %216 = vector.extract_strided_slice %214 {offsets = [0, 0], sizes = [8, 32], strides = [1, 1]} : vector<8x96xf32> to vector<8x32xf32>
    %217 = arith.addf %215, %216 : vector<8x32xf32>
    %218 = arith.negf %217 : vector<8x32xf32>
    %219 = math.exp %218 : vector<8x32xf32>
    %cst_56 = arith.constant 1.000000e+00 : f32
    %220 = vector.broadcast %cst_56 : f32 to vector<8x32xf32>
    %221 = arith.addf %220, %219 : vector<8x32xf32>
    %222 = arith.divf %220, %221 : vector<8x32xf32>
    %223 = vector.extract_strided_slice %210 {offsets = [0, 32], sizes = [8, 32], strides = [1, 1]} : vector<8x96xf32> to vector<8x32xf32>
    %224 = vector.extract_strided_slice %214 {offsets = [0, 32], sizes = [8, 32], strides = [1, 1]} : vector<8x96xf32> to vector<8x32xf32>
    %225 = arith.addf %223, %224 : vector<8x32xf32>
    %226 = arith.negf %225 : vector<8x32xf32>
    %227 = math.exp %226 : vector<8x32xf32>
    %cst_57 = arith.constant 1.000000e+00 : f32
    %228 = vector.broadcast %cst_57 : f32 to vector<8x32xf32>
    %229 = arith.addf %228, %227 : vector<8x32xf32>
    %230 = arith.divf %228, %229 : vector<8x32xf32>
    %231 = vector.extract_strided_slice %210 {offsets = [0, 64], sizes = [8, 32], strides = [1, 1]} : vector<8x96xf32> to vector<8x32xf32>
    %232 = vector.extract_strided_slice %214 {offsets = [0, 64], sizes = [8, 32], strides = [1, 1]} : vector<8x96xf32> to vector<8x32xf32>
    %233 = arith.mulf %222, %232 : vector<8x32xf32>
    %234 = arith.addf %231, %233 : vector<8x32xf32>
    %235 = math.tanh %234 : vector<8x32xf32>
    %cst_58 = arith.constant 1.000000e+00 : f32
    %236 = vector.broadcast %cst_58 : f32 to vector<8x32xf32>
    %237 = arith.subf %236, %230 : vector<8x32xf32>
    %238 = arith.mulf %237, %235 : vector<8x32xf32>
    %239 = arith.mulf %230, %200 : vector<8x32xf32>
    %240 = arith.addf %238, %239 : vector<8x32xf32>
    %241 = arith.index_cast %c5_i32 : i32 to index
    %c0_59 = arith.constant 0 : index
    %c0_60 = arith.constant 0 : index
    %242 = vector.load %arg6[%241, %c0_59, %c0_60] : memref<8x8x32xf32, #tpu.memory_space<vmem>>, vector<1x8x32xf32>
    %243 = vector.shape_cast %242 : vector<1x8x32xf32> to vector<8x32xf32>
    %244 = vector.shape_cast %240 : vector<8x32xf32> to vector<1x8x32xf32>
    tpu.vector_store %arg6[%241, %c0_59, %c0_60], %244 {strides = array<i32>} : memref<8x8x32xf32, #tpu.memory_space<vmem>>, vector<1x8x32xf32>,
    %c6_i32 = arith.constant 6 : i32
    %245 = arith.index_cast %c6_i32 : i32 to index
    %c0_61 = arith.constant 0 : index
    %c0_62 = arith.constant 0 : index
    %246 = vector.load %arg1[%245, %c0_61, %c0_62] : memref<8x8x16xbf16, #tpu.memory_space<vmem>>, vector<1x8x16xbf16>
    %247 = vector.shape_cast %246 : vector<1x8x16xbf16> to vector<8x16xbf16>
    %cst_63 = arith.constant dense<0.000000e+00> : vector<8x96xf32>
    %248 = tpu.matmul %247, %0, %cst_63 {dimension_numbers = #tpu.dot_dimension_numbers<[1], [0], [0], [1], [0, 0, 1, 1], [], []>} : vector<8x16xbf16>, vector<16x96xbf16>, vector<8x96xf32> -> vector<8x96xf32>
    %249 = vector.broadcast %2 : vector<1x96xf32> to vector<8x96xf32>
    %250 = arith.addf %248, %249 : vector<8x96xf32>
    %251 = arith.truncf %240 : vector<8x32xf32> to vector<8x32xbf16>
    %cst_64 = arith.constant dense<0.000000e+00> : vector<8x96xf32>
    %252 = tpu.matmul %251, %1, %cst_64 {dimension_numbers = #tpu.dot_dimension_numbers<[1], [0], [0], [1], [0, 0, 1, 1], [], []>} : vector<8x32xbf16>, vector<32x96xbf16>, vector<8x96xf32> -> vector<8x96xf32>
    %253 = vector.broadcast %3 : vector<1x96xf32> to vector<8x96xf32>
    %254 = arith.addf %252, %253 : vector<8x96xf32>
    %255 = vector.extract_strided_slice %250 {offsets = [0, 0], sizes = [8, 32], strides = [1, 1]} : vector<8x96xf32> to vector<8x32xf32>
    %256 = vector.extract_strided_slice %254 {offsets = [0, 0], sizes = [8, 32], strides = [1, 1]} : vector<8x96xf32> to vector<8x32xf32>
    %257 = arith.addf %255, %256 : vector<8x32xf32>
    %258 = arith.negf %257 : vector<8x32xf32>
    %259 = math.exp %258 : vector<8x32xf32>
    %cst_65 = arith.constant 1.000000e+00 : f32
    %260 = vector.broadcast %cst_65 : f32 to vector<8x32xf32>
    %261 = arith.addf %260, %259 : vector<8x32xf32>
    %262 = arith.divf %260, %261 : vector<8x32xf32>
    %263 = vector.extract_strided_slice %250 {offsets = [0, 32], sizes = [8, 32], strides = [1, 1]} : vector<8x96xf32> to vector<8x32xf32>
    %264 = vector.extract_strided_slice %254 {offsets = [0, 32], sizes = [8, 32], strides = [1, 1]} : vector<8x96xf32> to vector<8x32xf32>
    %265 = arith.addf %263, %264 : vector<8x32xf32>
    %266 = arith.negf %265 : vector<8x32xf32>
    %267 = math.exp %266 : vector<8x32xf32>
    %cst_66 = arith.constant 1.000000e+00 : f32
    %268 = vector.broadcast %cst_66 : f32 to vector<8x32xf32>
    %269 = arith.addf %268, %267 : vector<8x32xf32>
    %270 = arith.divf %268, %269 : vector<8x32xf32>
    %271 = vector.extract_strided_slice %250 {offsets = [0, 64], sizes = [8, 32], strides = [1, 1]} : vector<8x96xf32> to vector<8x32xf32>
    %272 = vector.extract_strided_slice %254 {offsets = [0, 64], sizes = [8, 32], strides = [1, 1]} : vector<8x96xf32> to vector<8x32xf32>
    %273 = arith.mulf %262, %272 : vector<8x32xf32>
    %274 = arith.addf %271, %273 : vector<8x32xf32>
    %275 = math.tanh %274 : vector<8x32xf32>
    %cst_67 = arith.constant 1.000000e+00 : f32
    %276 = vector.broadcast %cst_67 : f32 to vector<8x32xf32>
    %277 = arith.subf %276, %270 : vector<8x32xf32>
    %278 = arith.mulf %277, %275 : vector<8x32xf32>
    %279 = arith.mulf %270, %240 : vector<8x32xf32>
    %280 = arith.addf %278, %279 : vector<8x32xf32>
    %281 = arith.index_cast %c6_i32 : i32 to index
    %c0_68 = arith.constant 0 : index
    %c0_69 = arith.constant 0 : index
    %282 = vector.load %arg6[%281, %c0_68, %c0_69] : memref<8x8x32xf32, #tpu.memory_space<vmem>>, vector<1x8x32xf32>
    %283 = vector.shape_cast %282 : vector<1x8x32xf32> to vector<8x32xf32>
    %284 = vector.shape_cast %280 : vector<8x32xf32> to vector<1x8x32xf32>
    tpu.vector_store %arg6[%281, %c0_68, %c0_69], %284 {strides = array<i32>} : memref<8x8x32xf32, #tpu.memory_space<vmem>>, vector<1x8x32xf32>,
    %c7_i32 = arith.constant 7 : i32
    %285 = arith.index_cast %c7_i32 : i32 to index
    %c0_70 = arith.constant 0 : index
    %c0_71 = arith.constant 0 : index
    %286 = vector.load %arg1[%285, %c0_70, %c0_71] : memref<8x8x16xbf16, #tpu.memory_space<vmem>>, vector<1x8x16xbf16>
    %287 = vector.shape_cast %286 : vector<1x8x16xbf16> to vector<8x16xbf16>
    %cst_72 = arith.constant dense<0.000000e+00> : vector<8x96xf32>
    %288 = tpu.matmul %287, %0, %cst_72 {dimension_numbers = #tpu.dot_dimension_numbers<[1], [0], [0], [1], [0, 0, 1, 1], [], []>} : vector<8x16xbf16>, vector<16x96xbf16>, vector<8x96xf32> -> vector<8x96xf32>
    %289 = vector.broadcast %2 : vector<1x96xf32> to vector<8x96xf32>
    %290 = arith.addf %288, %289 : vector<8x96xf32>
    %291 = arith.truncf %280 : vector<8x32xf32> to vector<8x32xbf16>
    %cst_73 = arith.constant dense<0.000000e+00> : vector<8x96xf32>
    %292 = tpu.matmul %291, %1, %cst_73 {dimension_numbers = #tpu.dot_dimension_numbers<[1], [0], [0], [1], [0, 0, 1, 1], [], []>} : vector<8x32xbf16>, vector<32x96xbf16>, vector<8x96xf32> -> vector<8x96xf32>
    %293 = vector.broadcast %3 : vector<1x96xf32> to vector<8x96xf32>
    %294 = arith.addf %292, %293 : vector<8x96xf32>
    %295 = vector.extract_strided_slice %290 {offsets = [0, 0], sizes = [8, 32], strides = [1, 1]} : vector<8x96xf32> to vector<8x32xf32>
    %296 = vector.extract_strided_slice %294 {offsets = [0, 0], sizes = [8, 32], strides = [1, 1]} : vector<8x96xf32> to vector<8x32xf32>
    %297 = arith.addf %295, %296 : vector<8x32xf32>
    %298 = arith.negf %297 : vector<8x32xf32>
    %299 = math.exp %298 : vector<8x32xf32>
    %cst_74 = arith.constant 1.000000e+00 : f32
    %300 = vector.broadcast %cst_74 : f32 to vector<8x32xf32>
    %301 = arith.addf %300, %299 : vector<8x32xf32>
    %302 = arith.divf %300, %301 : vector<8x32xf32>
    %303 = vector.extract_strided_slice %290 {offsets = [0, 32], sizes = [8, 32], strides = [1, 1]} : vector<8x96xf32> to vector<8x32xf32>
    %304 = vector.extract_strided_slice %294 {offsets = [0, 32], sizes = [8, 32], strides = [1, 1]} : vector<8x96xf32> to vector<8x32xf32>
    %305 = arith.addf %303, %304 : vector<8x32xf32>
    %306 = arith.negf %305 : vector<8x32xf32>
    %307 = math.exp %306 : vector<8x32xf32>
    %cst_75 = arith.constant 1.000000e+00 : f32
    %308 = vector.broadcast %cst_75 : f32 to vector<8x32xf32>
    %309 = arith.addf %308, %307 : vector<8x32xf32>
    %310 = arith.divf %308, %309 : vector<8x32xf32>
    %311 = vector.extract_strided_slice %290 {offsets = [0, 64], sizes = [8, 32], strides = [1, 1]} : vector<8x96xf32> to vector<8x32xf32>
    %312 = vector.extract_strided_slice %294 {offsets = [0, 64], sizes = [8, 32], strides = [1, 1]} : vector<8x96xf32> to vector<8x32xf32>
    %313 = arith.mulf %302, %312 : vector<8x32xf32>
    %314 = arith.addf %311, %313 : vector<8x32xf32>
    %315 = math.tanh %314 : vector<8x32xf32>
    %cst_76 = arith.constant 1.000000e+00 : f32
    %316 = vector.broadcast %cst_76 : f32 to vector<8x32xf32>
    %317 = arith.subf %316, %310 : vector<8x32xf32>
    %318 = arith.mulf %317, %315 : vector<8x32xf32>
    %319 = arith.mulf %310, %280 : vector<8x32xf32>
    %320 = arith.addf %318, %319 : vector<8x32xf32>
    %321 = arith.index_cast %c7_i32 : i32 to index
    %c0_77 = arith.constant 0 : index
    %c0_78 = arith.constant 0 : index
    %322 = vector.load %arg6[%321, %c0_77, %c0_78] : memref<8x8x32xf32, #tpu.memory_space<vmem>>, vector<1x8x32xf32>
    %323 = vector.shape_cast %322 : vector<1x8x32xf32> to vector<8x32xf32>
    %324 = vector.shape_cast %320 : vector<8x32xf32> to vector<1x8x32xf32>
    tpu.vector_store %arg6[%321, %c0_77, %c0_78], %324 {strides = array<i32>} : memref<8x8x32xf32, #tpu.memory_space<vmem>>, vector<1x8x32xf32>,
    %c8_i32 = arith.constant 8 : i32
    %c0_79 = arith.constant 0 : index
    %c0_80 = arith.constant 0 : index
    %325 = vector.load %arg7[%c0_79, %c0_80] : memref<8x32xf32, #tpu.memory_space<vmem>>, vector<8x32xf32>
    tpu.vector_store %arg7[%c0_79, %c0_80], %320 {strides = array<i32>} : memref<8x32xf32, #tpu.memory_space<vmem>>, vector<8x32xf32>,
    return
  }
  func.func @transform_0(%arg0: i32) -> (i32, i32, i32) {
    %c0_i32 = arith.constant 0 : i32
    %c0_i32_0 = arith.constant 0 : i32
    %c0_i32_1 = arith.constant 0 : i32
    %c0_i32_2 = arith.constant 0 : i32
    return %c0_i32, %c0_i32_0, %c0_i32_1 : i32, i32, i32
  }
  func.func @transform_1(%arg0: i32) -> (i32, i32) {
    %c0_i32 = arith.constant 0 : i32
    %c0_i32_0 = arith.constant 0 : i32
    %c0_i32_1 = arith.constant 0 : i32
    return %c0_i32, %c0_i32_0 : i32, i32
  }
  func.func @transform_2(%arg0: i32) -> (i32, i32) {
    %c0_i32 = arith.constant 0 : i32
    %c0_i32_0 = arith.constant 0 : i32
    %c0_i32_1 = arith.constant 0 : i32
    return %c0_i32, %c0_i32_0 : i32, i32
  }
  func.func @transform_3(%arg0: i32) -> (i32, i32) {
    %c0_i32 = arith.constant 0 : i32
    %c0_i32_0 = arith.constant 0 : i32
    %c0_i32_1 = arith.constant 0 : i32
    return %c0_i32, %c0_i32_0 : i32, i32
  }
  func.func @transform_4(%arg0: i32) -> (i32, i32) {
    %c0_i32 = arith.constant 0 : i32
    %c0_i32_0 = arith.constant 0 : i32
    %c0_i32_1 = arith.constant 0 : i32
    return %c0_i32, %c0_i32_0 : i32, i32
  }
  func.func @transform_5(%arg0: i32) -> (i32, i32, i32) {
    %c0_i32 = arith.constant 0 : i32
    %c0_i32_0 = arith.constant 0 : i32
    %c0_i32_1 = arith.constant 0 : i32
    %c0_i32_2 = arith.constant 0 : i32
    return %c0_i32, %c0_i32_0, %c0_i32_1 : i32, i32, i32
  }
  func.func @transform_6(%arg0: i32) -> (i32, i32) {
    %c0_i32 = arith.constant 0 : i32
    %c0_i32_0 = arith.constant 0 : i32
    %c0_i32_1 = arith.constant 0 : i32
    return %c0_i32, %c0_i32_0 : i32, i32
  }
}

</mosaic_0001>

<llo_original>
// kernel: tpu_custom_call.1
$region0: #{tpu_custom_call.1}
  #allocation0 [shape = 'u32[]', space=smem, size = 0x4, offset = 0x4, fixed_abs, tag = 'smem constant byte address 0x4 - core index']
  #allocation1 [shape = 'u32[144,128]{1,0:T(1,128)}', space=vmem, size = 0x12000, scoped, tag = 'internal scratch']
  %s0 = inlined_call_operand.hbm [shape: bf16[8,8,16], index: 0, kind: input, shape index: {}]
  %s1 = inlined_call_operand.hbm [shape: bf16[16,96], index: 1, kind: input, shape index: {}]
  %s2 = inlined_call_operand.hbm [shape: bf16[32,96], index: 2, kind: input, shape index: {}]
  %s3 = inlined_call_operand.vmem [shape: f32[1,96], index: 3, kind: input, shape index: {}]
  %s4 = inlined_call_operand.vmem [shape: f32[1,96], index: 4, kind: input, shape index: {}]
  %s5 = inlined_call_operand.hbm [shape: f32[8,8,32], index: 5, kind: output, shape index: {0}]
  %s6 = inlined_call_operand.hbm [shape: f32[8,32], index: 6, kind: output, shape index: {1}]
  %7 = xla_tuple %s5, %s6
  %s8 = sld [smem:[#allocation0]]
  $region50: #{tpu_custom_call.1} parent=0
    _
  %s10 = ssub.s32 1, %s8
  %s11 = scalar_select 0, %s10, %s8
  $region1: #{tpu_custom_call.1} parent=0
    #allocation2 [shape = 'u8[16384]{0}', space=vmem, size = 0x4000, scoped, tag = 'input window, operand 0, single buffered']
    #allocation3 [shape = 's32[1]{0}', space=sflag, size = 0x4, scoped, tag = 'scoped memory for tpu_custom_call.1']
    #allocation4 [shape = 's32[1]{0}', space=sflag, size = 0x4, scoped, tag = 'scoped memory for tpu_custom_call.1']
    #allocation5 [shape = 'u8[4096]{0}', space=vmem, size = 0x1000, scoped, tag = 'input window, operand 1, single buffered']
    #allocation6 [shape = 's32[1]{0}', space=sflag, size = 0x4, scoped, tag = 'scoped memory for tpu_custom_call.1']
    #allocation7 [shape = 'u8[8192]{0}', space=vmem, size = 0x2000, scoped, tag = 'input window, operand 2, single buffered']
    #allocation8 [shape = 'u8[32768]{0}', space=vmem, size = 0x8000, scoped, tag = 'output window, operand 0, single buffered']
    #allocation9 [shape = 'u8[4096]{0}', space=vmem, size = 0x1000, scoped, tag = 'output window, operand 1, single buffered']
    #allocation10 [shape = 's32[1]{0}', space=sflag, size = 0x4, scoped, tag = 'scoped memory for tpu_custom_call.1']
    %12 = vsyncpa [#allocation3], 0
    %13 = vsyncpa [#allocation6], 0
    %14 = vsyncpa [#allocation4], 0
    %15 = vsyncpa [#allocation10], 0
    // Predicated region
    $region2: #{tpu_custom_call.1} parent=1 // pred_check
      _
    $region3: #{tpu_custom_call.1} parent=1 // pred_check_branch
      %17 = sbr.rel (0) target = $region5
    $region4: #{tpu_custom_call.1} parent=1 // pred_region
      %s19 = ssub.s32 512, 512
      %20 = vsyncadd [#allocation3], %s19
      %s21 = sshll.u32 [#allocation2], 4
      %s22 = int_to_ptr.vmem [resolvable:$true] %s21
      %27 = dma.hbm_to_vmem [thread:$0]  %s0, 512, %s22, [#allocation3], 64, 64, 4
    $region5: #{tpu_custom_call.1} parent=1 // pred_fallthru
      _
    // Predicated region
    $region6: #{tpu_custom_call.1} parent=1 // pred_check
      _
    $region7: #{tpu_custom_call.1} parent=1 // pred_check_branch
      %29 = sbr.rel (0) target = $region9
    $region8: #{tpu_custom_call.1} parent=1 // pred_region
      %s31 = ssub.s32 128, 128
      %32 = vsyncadd [#allocation6], %s31
      %s33 = sshll.u32 [#allocation5], 4
      %s34 = int_to_ptr.vmem [resolvable:$true] %s33
      %39 = dma.hbm_to_vmem [thread:$0]  %s1, 128, %s34, [#allocation6], 64, 64, 4
    $region9: #{tpu_custom_call.1} parent=1 // pred_fallthru
      _
    // Predicated region
    $region10: #{tpu_custom_call.1} parent=1 // pred_check
      _
    $region11: #{tpu_custom_call.1} parent=1 // pred_check_branch
      %41 = sbr.rel (0) target = $region13
    $region12: #{tpu_custom_call.1} parent=1 // pred_region
      %s43 = ssub.s32 256, 256
      %44 = vsyncadd [#allocation6], %s43
      %s45 = sshll.u32 [#allocation7], 4
      %s46 = int_to_ptr.vmem [resolvable:$true] %s45
      %51 = dma.hbm_to_vmem [thread:$0]  %s2, 256, %s46, [#allocation6], 64, 64, 4
    $region13: #{tpu_custom_call.1} parent=1 // pred_fallthru
      _
    // Predicated region
    $region14: #{tpu_custom_call.1} parent=1 // pred_check
      _
    $region15: #{tpu_custom_call.1} parent=1 // pred_check_branch
      %53 = sbr.rel (0) target = $region17
    $region16: #{tpu_custom_call.1} parent=1 // pred_region
      _
    $region17: #{tpu_custom_call.1} parent=1 // pred_fallthru
      _
    // Predicated region
    $region18: #{tpu_custom_call.1} parent=1 // pred_check
      _
    $region19: #{tpu_custom_call.1} parent=1 // pred_check_branch
      %55 = sbr.rel (0) target = $region21
    $region20: #{tpu_custom_call.1} parent=1 // pred_region
      _
    $region21: #{tpu_custom_call.1} parent=1 // pred_fallthru
      _
    // Predicated region
    $region22: #{tpu_custom_call.1} parent=1 // pred_check
      _
    $region23: #{tpu_custom_call.1} parent=1 // pred_check_branch
      %57 = sbr.rel (0) target = $region25
    $region24: #{tpu_custom_call.1} parent=1 // pred_region
      %58 = dma.done [#allocation3], 512
    $region25: #{tpu_custom_call.1} parent=1 // pred_fallthru
      _
    // Predicated region
    $region26: #{tpu_custom_call.1} parent=1 // pred_check
      _
    $region27: #{tpu_custom_call.1} parent=1 // pred_check_branch
      %60 = sbr.rel (0) target = $region29
    $region28: #{tpu_custom_call.1} parent=1 // pred_region
      %61 = dma.done [#allocation6], 128
    $region29: #{tpu_custom_call.1} parent=1 // pred_fallthru
      _
    // Predicated region
    $region30: #{tpu_custom_call.1} parent=1 // pred_check
      _
    $region31: #{tpu_custom_call.1} parent=1 // pred_check_branch
      %63 = sbr.rel (0) target = $region33
    $region32: #{tpu_custom_call.1} parent=1 // pred_region
      %64 = dma.done [#allocation6], 256
    $region33: #{tpu_custom_call.1} parent=1 // pred_fallthru
      _
    %v66 = vld [vmem:[#allocation5] sm:$0xf]
    %v67 = vld [vmem:[#allocation5 + $0x4] sm:$0xf]
    %v68 = vld [vmem:[#allocation7] sm:$0xf]
    %v69 = vld [vmem:[#allocation7 + $0x4] sm:$0xf]
    %v70 = vld [vmem:[#allocation7 + $0x8] sm:$0xf]
    %v71 = vld [vmem:[#allocation7 + $0xc] sm:$0xf]
    %v72 = vld [vmem:[%s3] sm:$0x1]
    %v73 = vld [vmem:[%s4] sm:$0x1]
    %v74 = vld [vmem:[#allocation2] sm:$0xf]
    %v76 = vlaneseq
    %v77 = vshrl.u32 %v76, 7
    %v78 = vsub.s32 0, %v77
    %v79 = vrot.slane %v72, %v78
    %v83 = vunpack.c.l.b16 %v66
    %v84 = vunpack.c.l.b16 %v67
    %v85 = vpack.c.b16 %v84, %v83
    %vm87 = vcmask 130048
    %v89 = vsel %vm87, %v74, 0
    %91 = vmatprep.subr.bf16.mxu0 0
    %92 = vmatpush1.bf16.msra.mxu0 %v85
    %93 = vmatprep.subr.bf16.mxu0 0
    %94 = vmatpush1.bf16.msra.mxu0 0
    %95 = vmatprep.subr.bf16.mxu0 0
    %96 = vmatpush1.bf16.msra.mxu0 0
    %97 = vmatprep.subr.bf16.mxu0 0
    %98 = vmatpush1.bf16.msra.mxu0 0
    %99 = vmatprep.subr.bf16.mxu0 0
    %100 = vmatpush1.bf16.msra.mxu0 0
    %101 = vmatprep.subr.bf16.mxu0 0
    %102 = vmatpush1.bf16.msra.mxu0 0
    %103 = vmatprep.subr.bf16.mxu0 0
    %104 = vmatpush1.bf16.msra.mxu0 0
    %105 = vmatprep.subr.bf16.mxu0 0
    %106 = vmatpush1.bf16.msra.mxu0 0
    %107 = vmatprep.subr.bf16.mxu0 0
    %108 = vmatpush1.bf16.msra.mxu0 0
    %109 = vmatprep.subr.bf16.mxu0 0
    %110 = vmatpush1.bf16.msra.mxu0 0
    %111 = vmatprep.subr.bf16.mxu0 0
    %112 = vmatpush1.bf16.msra.mxu0 0
    %113 = vmatprep.subr.bf16.mxu0 0
    %114 = vmatpush1.bf16.msra.mxu0 0
    %115 = vmatprep.subr.bf16.mxu0 0
    %116 = vmatpush1.bf16.msra.mxu0 0
    %117 = vmatprep.subr.bf16.mxu0 0
    %118 = vmatpush1.bf16.msra.mxu0 0
    %119 = vmatprep.subr.bf16.mxu0 0
    %120 = vmatpush1.bf16.msra.mxu0 0
    %121 = vmatprep.subr.bf16.mxu0 0
    %122 = vmatpush1.bf16.msra.mxu0 0
    %123 = vmatprep.mubr.bf16.mxu0 0
    %124 = vmatmul.mubr.bf16.gmra.mrb[0].mxu0 %v89
    %v125 = vpop.f32.mrb[0].mxu0
    %v126 = vadd.f32 %v79, %v125
    %v127 = vpop.f32.mrb[0].mxu0
    %v128 = vpop.f32.mrb[0].mxu0
    %v129 = vpop.f32.mrb[0].mxu0
    %130 = vdwg.mxu0
    %v132 = vlaneseq
    %v133 = vshrl.u32 %v132, 7
    %v134 = vsub.s32 0, %v133
    %v135 = vrot.slane %v73, %v134
    %v141 = vunpack.c.l.b16 %v68
    %v142 = vunpack.c.l.b16 %v69
    %v143 = vunpack.c.l.b16 %v70
    %v144 = vunpack.c.l.b16 %v71
    %v145 = vpack.c.b16 %v142, %v141
    %v146 = vpack.c.b16 %v144, %v143
    %vm149 = vcmask 261120
    %v151 = vsel %vm149, 0, 0
    %153 = vmatprep.subr.bf16.mxu0 0
    %154 = vmatpush1.bf16.msra.mxu0 %v145
    %155 = vmatprep.subr.bf16.mxu0 0
    %156 = vmatpush1.bf16.msra.mxu0 %v146
    %157 = vmatprep.subr.bf16.mxu0 0
    %158 = vmatpush1.bf16.msra.mxu0 0
    %159 = vmatprep.subr.bf16.mxu0 0
    %160 = vmatpush1.bf16.msra.mxu0 0
    %161 = vmatprep.subr.bf16.mxu0 0
    %162 = vmatpush1.bf16.msra.mxu0 0
    %163 = vmatprep.subr.bf16.mxu0 0
    %164 = vmatpush1.bf16.msra.mxu0 0
    %165 = vmatprep.subr.bf16.mxu0 0
    %166 = vmatpush1.bf16.msra.mxu0 0
    %167 = vmatprep.subr.bf16.mxu0 0
    %168 = vmatpush1.bf16.msra.mxu0 0
    %169 = vmatprep.subr.bf16.mxu0 0
    %170 = vmatpush1.bf16.msra.mxu0 0
    %171 = vmatprep.subr.bf16.mxu0 0
    %172 = vmatpush1.bf16.msra.mxu0 0
    %173 = vmatprep.subr.bf16.mxu0 0
    %174 = vmatpush1.bf16.msra.mxu0 0
    %175 = vmatprep.subr.bf16.mxu0 0
    %176 = vmatpush1.bf16.msra.mxu0 0
    %177 = vmatprep.subr.bf16.mxu0 0
    %178 = vmatpush1.bf16.msra.mxu0 0
    %179 = vmatprep.subr.bf16.mxu0 0
    %180 = vmatpush1.bf16.msra.mxu0 0
    %181 = vmatprep.subr.bf16.mxu0 0
    %182 = vmatpush1.bf16.msra.mxu0 0
    %183 = vmatprep.subr.bf16.mxu0 0
    %184 = vmatpush1.bf16.msra.mxu0 0
    %185 = vmatprep.mubr.bf16.mxu0 0
    %186 = vmatmul.mubr.bf16.gmra.mrb[0].mxu0 %v151
    %v187 = vpop.f32.mrb[0].mxu0
    %v188 = vadd.f32 %v135, %v187
    %v189 = vpop.f32.mrb[0].mxu0
    %v190 = vpop.f32.mrb[0].mxu0
    %v191 = vpop.f32.mrb[0].mxu0
    %192 = vdwg.mxu0
    %v193 = vadd.f32 %v126, %v188
    %v194 = vxor.u32 %v193, 2147483648
    %v195 = vmul.f32 %v194, 1.442695
    %v196 = vpow.pop %v195
    %v197 = vadd.f32 %v196, 1.0
    %v198 = vrcp.pop %v197
    %v199 = vmul.f32 1.0, %v198
    %201 = vrot.lane.b32.xlu0 %v188, 64
    %v202 = vpop.permute.xlu0 %201
    %v204 = vmul.f32 %v199, %v202
    %206 = vrot.lane.b32.xlu0 %v204, 64
    %v207 = vpop.permute.xlu0 %206
    %v209 = vadd.f32 %v126, %v207
    %v210 = vtanh.pop %v209
    %v211 = vsub.f32 1.0, %v199
    %213 = vrot.lane.b32.xlu0 %v210, 96
    %v214 = vpop.permute.xlu0 %213
    %v216 = vmul.f32 %v211, %v214
    %v217 = vmul.f32 %v199, 0.0
    %v218 = vadd.f32 %v216, %v217
    %220 = vrot.lane.b32.xlu0 %v218, 96
    %v221 = vpop.permute.xlu0 %220
    %223 = vst.msk [vmem:[#allocation8] sm:$0xff] %vm149, %v221
    %s224 = scalar_lea.vmem [#allocation2], 4
    %v225 = vld [vmem:[%s224] sm:$0xf]
    %v227 = vsel %vm87, %v225, 0
    %229 = vmatprep.subr.bf16.mxu0 0
    %230 = vmatpush1.bf16.msra.mxu0 %v85
    %231 = vmatprep.subr.bf16.mxu0 0
    %232 = vmatpush1.bf16.msra.mxu0 0
    %233 = vmatprep.subr.bf16.mxu0 0
    %234 = vmatpush1.bf16.msra.mxu0 0
    %235 = vmatprep.subr.bf16.mxu0 0
    %236 = vmatpush1.bf16.msra.mxu0 0
    %237 = vmatprep.subr.bf16.mxu0 0
    %238 = vmatpush1.bf16.msra.mxu0 0
    %239 = vmatprep.subr.bf16.mxu0 0
    %240 = vmatpush1.bf16.msra.mxu0 0
    %241 = vmatprep.subr.bf16.mxu0 0
    %242 = vmatpush1.bf16.msra.mxu0 0
    %243 = vmatprep.subr.bf16.mxu0 0
    %244 = vmatpush1.bf16.msra.mxu0 0
    %245 = vmatprep.subr.bf16.mxu0 0
    %246 = vmatpush1.bf16.msra.mxu0 0
    %247 = vmatprep.subr.bf16.mxu0 0
    %248 = vmatpush1.bf16.msra.mxu0 0
    %249 = vmatprep.subr.bf16.mxu0 0
    %250 = vmatpush1.bf16.msra.mxu0 0
    %251 = vmatprep.subr.bf16.mxu0 0
    %252 = vmatpush1.bf16.msra.mxu0 0
    %253 = vmatprep.subr.bf16.mxu0 0
    %254 = vmatpush1.bf16.msra.mxu0 0
    %255 = vmatprep.subr.bf16.mxu0 0
    %256 = vmatpush1.bf16.msra.mxu0 0
    %257 = vmatprep.subr.bf16.mxu0 0
    %258 = vmatpush1.bf16.msra.mxu0 0
    %259 = vmatprep.subr.bf16.mxu0 0
    %260 = vmatpush1.bf16.msra.mxu0 0
    %261 = vmatprep.mubr.bf16.mxu0 0
    %262 = vmatmul.mubr.bf16.gmra.mrb[0].mxu0 %v227
    %v263 = vpop.f32.mrb[0].mxu0
    %v264 = vadd.f32 %v79, %v263
    %v265 = vpop.f32.mrb[0].mxu0
    %v266 = vpop.f32.mrb[0].mxu0
    %v267 = vpop.f32.mrb[0].mxu0
    %268 = vdwg.mxu0
    %v269 = vpack.c.bf16 %v218, %v218
    %271 = vrot.lane.b32.xlu0 %v269, 96
    %v272 = vpop.permute.xlu0 %271
    %v274 = vsel %vm149, %v272, 0
    %276 = vmatprep.subr.bf16.mxu0 0
    %277 = vmatpush1.bf16.msra.mxu0 %v145
    %278 = vmatprep.subr.bf16.mxu0 0
    %279 = vmatpush1.bf16.msra.mxu0 %v146
    %280 = vmatprep.subr.bf16.mxu0 0
    %281 = vmatpush1.bf16.msra.mxu0 0
    %282 = vmatprep.subr.bf16.mxu0 0
    %283 = vmatpush1.bf16.msra.mxu0 0
    %284 = vmatprep.subr.bf16.mxu0 0
    %285 = vmatpush1.bf16.msra.mxu0 0
    %286 = vmatprep.subr.bf16.mxu0 0
    %287 = vmatpush1.bf16.msra.mxu0 0
    %288 = vmatprep.subr.bf16.mxu0 0
    %289 = vmatpush1.bf16.msra.mxu0 0
    %290 = vmatprep.subr.bf16.mxu0 0
    %291 = vmatpush1.bf16.msra.mxu0 0
    %292 = vmatprep.subr.bf16.mxu0 0
    %293 = vmatpush1.bf16.msra.mxu0 0
    %294 = vmatprep.subr.bf16.mxu0 0
    %295 = vmatpush1.bf16.msra.mxu0 0
    %296 = vmatprep.subr.bf16.mxu0 0
    %297 = vmatpush1.bf16.msra.mxu0 0
    %298 = vmatprep.subr.bf16.mxu0 0
    %299 = vmatpush1.bf16.msra.mxu0 0
    %300 = vmatprep.subr.bf16.mxu0 0
    %301 = vmatpush1.bf16.msra.mxu0 0
    %302 = vmatprep.subr.bf16.mxu0 0
    %303 = vmatpush1.bf16.msra.mxu0 0
    %304 = vmatprep.subr.bf16.mxu0 0
    %305 = vmatpush1.bf16.msra.mxu0 0
    %306 = vmatprep.subr.bf16.mxu0 0
    %307 = vmatpush1.bf16.msra.mxu0 0
    %308 = vmatprep.mubr.bf16.mxu0 0
    %309 = vmatmul.mubr.bf16.gmra.mrb[0].mxu0 %v274
    %v310 = vpop.f32.mrb[0].mxu0
    %v311 = vadd.f32 %v135, %v310
    %v312 = vpop.f32.mrb[0].mxu0
    %v313 = vpop.f32.mrb[0].mxu0
    %v314 = vpop.f32.mrb[0].mxu0
    %315 = vdwg.mxu0
    %v316 = vadd.f32 %v264, %v311
    %v317 = vxor.u32 %v316, 2147483648
    %v318 = vmul.f32 %v317, 1.442695
    %v319 = vpow.pop %v318
    %v320 = vadd.f32 %v319, 1.0
    %v321 = vrcp.pop %v320
    %v322 = vmul.f32 1.0, %v321
    %324 = vrot.lane.b32.xlu0 %v311, 64
    %v325 = vpop.permute.xlu0 %324
    %v327 = vmul.f32 %v322, %v325
    %329 = vrot.lane.b32.xlu0 %v327, 64
    %v330 = vpop.permute.xlu0 %329
    %v332 = vadd.f32 %v264, %v330
    %v333 = vtanh.pop %v332
    %v334 = vsub.f32 1.0, %v322
    %336 = vrot.lane.b32.xlu0 %v333, 96
    %v337 = vpop.permute.xlu0 %336
    %v339 = vmul.f32 %v334, %v337
    %v340 = vmul.f32 %v322, %v218
    %v341 = vadd.f32 %v339, %v340
    %343 = vrot.lane.b32.xlu0 %v341, 96
    %v344 = vpop.permute.xlu0 %343
    %s346 = scalar_lea.vmem [#allocation8], 8
    %347 = vst.msk [vmem:[%s346] sm:$0xff] %vm149, %v344
    %s348 = scalar_lea.vmem [#allocation2], 8
    %v349 = vld [vmem:[%s348] sm:$0xf]
    %v351 = vsel %vm87, %v349, 0
    %353 = vmatprep.subr.bf16.mxu0 0
    %354 = vmatpush1.bf16.msra.mxu0 %v85
    %355 = vmatprep.subr.bf16.mxu0 0
    %356 = vmatpush1.bf16.msra.mxu0 0
    %357 = vmatprep.subr.bf16.mxu0 0
    %358 = vmatpush1.bf16.msra.mxu0 0
    %359 = vmatprep.subr.bf16.mxu0 0
    %360 = vmatpush1.bf16.msra.mxu0 0
    %361 = vmatprep.subr.bf16.mxu0 0
    %362 = vmatpush1.bf16.msra.mxu0 0
    %363 = vmatprep.subr.bf16.mxu0 0
    %364 = vmatpush1.bf16.msra.mxu0 0
    %365 = vmatprep.subr.bf16.mxu0 0
    %366 = vmatpush1.bf16.msra.mxu0 0
    %367 = vmatprep.subr.bf16.mxu0 0
    %368 = vmatpush1.bf16.msra.mxu0 0
    %369 = vmatprep.subr.bf16.mxu0 0
    %370 = vmatpush1.bf16.msra.mxu0 0
    %371 = vmatprep.subr.bf16.mxu0 0
    %372 = vmatpush1.bf16.msra.mxu0 0
    %373 = vmatprep.subr.bf16.mxu0 0
    %374 = vmatpush1.bf16.msra.mxu0 0
    %375 = vmatprep.subr.bf16.mxu0 0
    %376 = vmatpush1.bf16.msra.mxu0 0
    %377 = vmatprep.subr.bf16.mxu0 0
    %378 = vmatpush1.bf16.msra.mxu0 0
    %379 = vmatprep.subr.bf16.mxu0 0
    %380 = vmatpush1.bf16.msra.mxu0 0
    %381 = vmatprep.subr.bf16.mxu0 0
    %382 = vmatpush1.bf16.msra.mxu0 0
    %383 = vmatprep.subr.bf16.mxu0 0
    %384 = vmatpush1.bf16.msra.mxu0 0
    %385 = vmatprep.mubr.bf16.mxu0 0
    %386 = vmatmul.mubr.bf16.gmra.mrb[0].mxu0 %v351
    %v387 = vpop.f32.mrb[0].mxu0
    %v388 = vadd.f32 %v79, %v387
    %v389 = vpop.f32.mrb[0].mxu0
    %v390 = vpop.f32.mrb[0].mxu0
    %v391 = vpop.f32.mrb[0].mxu0
    %392 = vdwg.mxu0
    %v393 = vpack.c.bf16 %v341, %v341
    %395 = vrot.lane.b32.xlu0 %v393, 96
    %v396 = vpop.permute.xlu0 %395
    %v398 = vsel %vm149, %v396, 0
    %400 = vmatprep.subr.bf16.mxu0 0
    %401 = vmatpush1.bf16.msra.mxu0 %v145
    %402 = vmatprep.subr.bf16.mxu0 0
    %403 = vmatpush1.bf16.msra.mxu0 %v146
    %404 = vmatprep.subr.bf16.mxu0 0
    %405 = vmatpush1.bf16.msra.mxu0 0
    %406 = vmatprep.subr.bf16.mxu0 0
    %407 = vmatpush1.bf16.msra.mxu0 0
    %408 = vmatprep.subr.bf16.mxu0 0
    %409 = vmatpush1.bf16.msra.mxu0 0
    %410 = vmatprep.subr.bf16.mxu0 0
    %411 = vmatpush1.bf16.msra.mxu0 0
    %412 = vmatprep.subr.bf16.mxu0 0
    %413 = vmatpush1.bf16.msra.mxu0 0
    %414 = vmatprep.subr.bf16.mxu0 0
    %415 = vmatpush1.bf16.msra.mxu0 0
    %416 = vmatprep.subr.bf16.mxu0 0
    %417 = vmatpush1.bf16.msra.mxu0 0
    %418 = vmatprep.subr.bf16.mxu0 0
    %419 = vmatpush1.bf16.msra.mxu0 0
    %420 = vmatprep.subr.bf16.mxu0 0
    %421 = vmatpush1.bf16.msra.mxu0 0
    %422 = vmatprep.subr.bf16.mxu0 0
    %423 = vmatpush1.bf16.msra.mxu0 0
    %424 = vmatprep.subr.bf16.mxu0 0
    %425 = vmatpush1.bf16.msra.mxu0 0
    %426 = vmatprep.subr.bf16.mxu0 0
    %427 = vmatpush1.bf16.msra.mxu0 0
    %428 = vmatprep.subr.bf16.mxu0 0
    %429 = vmatpush1.bf16.msra.mxu0 0
    %430 = vmatprep.subr.bf16.mxu0 0
    %431 = vmatpush1.bf16.msra.mxu0 0
    %432 = vmatprep.mubr.bf16.mxu0 0
    %433 = vmatmul.mubr.bf16.gmra.mrb[0].mxu0 %v398
    %v434 = vpop.f32.mrb[0].mxu0
    %v435 = vadd.f32 %v135, %v434
    %v436 = vpop.f32.mrb[0].mxu0
    %v437 = vpop.f32.mrb[0].mxu0
    %v438 = vpop.f32.mrb[0].mxu0
    %439 = vdwg.mxu0
    %v440 = vadd.f32 %v388, %v435
    %v441 = vxor.u32 %v440, 2147483648
    %v442 = vmul.f32 %v441, 1.442695
    %v443 = vpow.pop %v442
    %v444 = vadd.f32 %v443, 1.0
    %v445 = vrcp.pop %v444
    %v446 = vmul.f32 1.0, %v445
    %448 = vrot.lane.b32.xlu0 %v435, 64
    %v449 = vpop.permute.xlu0 %448
    %v451 = vmul.f32 %v446, %v449
    %453 = vrot.lane.b32.xlu0 %v451, 64
    %v454 = vpop.permute.xlu0 %453
    %v456 = vadd.f32 %v388, %v454
    %v457 = vtanh.pop %v456
    %v458 = vsub.f32 1.0, %v446
    %460 = vrot.lane.b32.xlu0 %v457, 96
    %v461 = vpop.permute.xlu0 %460
    %v463 = vmul.f32 %v458, %v461
    %v464 = vmul.f32 %v446, %v341
    %v465 = vadd.f32 %v463, %v464
    %467 = vrot.lane.b32.xlu0 %v465, 96
    %v468 = vpop.permute.xlu0 %467
    %s470 = scalar_lea.vmem [#allocation8], 16
    %471 = vst.msk [vmem:[%s470] sm:$0xff] %vm149, %v468
    %s472 = scalar_lea.vmem [#allocation2], 12
    %v473 = vld [vmem:[%s472] sm:$0xf]
    %v475 = vsel %vm87, %v473, 0
    %477 = vmatprep.subr.bf16.mxu0 0
    %478 = vmatpush1.bf16.msra.mxu0 %v85
    %479 = vmatprep.subr.bf16.mxu0 0
    %480 = vmatpush1.bf16.msra.mxu0 0
    %481 = vmatprep.subr.bf16.mxu0 0
    %482 = vmatpush1.bf16.msra.mxu0 0
    %483 = vmatprep.subr.bf16.mxu0 0
    %484 = vmatpush1.bf16.msra.mxu0 0
    %485 = vmatprep.subr.bf16.mxu0 0
    %486 = vmatpush1.bf16.msra.mxu0 0
    %487 = vmatprep.subr.bf16.mxu0 0
    %488 = vmatpush1.bf16.msra.mxu0 0
    %489 = vmatprep.subr.bf16.mxu0 0
    %490 = vmatpush1.bf16.msra.mxu0 0
    %491 = vmatprep.subr.bf16.mxu0 0
    %492 = vmatpush1.bf16.msra.mxu0 0
    %493 = vmatprep.subr.bf16.mxu0 0
    %494 = vmatpush1.bf16.msra.mxu0 0
    %495 = vmatprep.subr.bf16.mxu0 0
    %496 = vmatpush1.bf16.msra.mxu0 0
    %497 = vmatprep.subr.bf16.mxu0 0
    %498 = vmatpush1.bf16.msra.mxu0 0
    %499 = vmatprep.subr.bf16.mxu0 0
    %500 = vmatpush1.bf16.msra.mxu0 0
    %501 = vmatprep.subr.bf16.mxu0 0
    %502 = vmatpush1.bf16.msra.mxu0 0
    %503 = vmatprep.subr.bf16.mxu0 0
    %504 = vmatpush1.bf16.msra.mxu0 0
    %505 = vmatprep.subr.bf16.mxu0 0
    %506 = vmatpush1.bf16.msra.mxu0 0
    %507 = vmatprep.subr.bf16.mxu0 0
    %508 = vmatpush1.bf16.msra.mxu0 0
    %509 = vmatprep.mubr.bf16.mxu0 0
    %510 = vmatmul.mubr.bf16.gmra.mrb[0].mxu0 %v475
    %v511 = vpop.f32.mrb[0].mxu0
    %v512 = vadd.f32 %v79, %v511
    %v513 = vpop.f32.mrb[0].mxu0
    %v514 = vpop.f32.mrb[0].mxu0
    %v515 = vpop.f32.mrb[0].mxu0
    %516 = vdwg.mxu0
    %v517 = vpack.c.bf16 %v465, %v465
    %519 = vrot.lane.b32.xlu0 %v517, 96
    %v520 = vpop.permute.xlu0 %519
    %v522 = vsel %vm149, %v520, 0
    %524 = vmatprep.subr.bf16.mxu0 0
    %525 = vmatpush1.bf16.msra.mxu0 %v145
    %526 = vmatprep.subr.bf16.mxu0 0
    %527 = vmatpush1.bf16.msra.mxu0 %v146
    %528 = vmatprep.subr.bf16.mxu0 0
    %529 = vmatpush1.bf16.msra.mxu0 0
    %530 = vmatprep.subr.bf16.mxu0 0
    %531 = vmatpush1.bf16.msra.mxu0 0
    %532 = vmatprep.subr.bf16.mxu0 0
    %533 = vmatpush1.bf16.msra.mxu0 0
    %534 = vmatprep.subr.bf16.mxu0 0
    %535 = vmatpush1.bf16.msra.mxu0 0
    %536 = vmatprep.subr.bf16.mxu0 0
    %537 = vmatpush1.bf16.msra.mxu0 0
    %538 = vmatprep.subr.bf16.mxu0 0
    %539 = vmatpush1.bf16.msra.mxu0 0
    %540 = vmatprep.subr.bf16.mxu0 0
    %541 = vmatpush1.bf16.msra.mxu0 0
    %542 = vmatprep.subr.bf16.mxu0 0
    %543 = vmatpush1.bf16.msra.mxu0 0
    %544 = vmatprep.subr.bf16.mxu0 0
    %545 = vmatpush1.bf16.msra.mxu0 0
    %546 = vmatprep.subr.bf16.mxu0 0
    %547 = vmatpush1.bf16.msra.mxu0 0
    %548 = vmatprep.subr.bf16.mxu0 0
    %549 = vmatpush1.bf16.msra.mxu0 0
    %550 = vmatprep.subr.bf16.mxu0 0
    %551 = vmatpush1.bf16.msra.mxu0 0
    %552 = vmatprep.subr.bf16.mxu0 0
    %553 = vmatpush1.bf16.msra.mxu0 0
    %554 = vmatprep.subr.bf16.mxu0 0
    %555 = vmatpush1.bf16.msra.mxu0 0
    %556 = vmatprep.mubr.bf16.mxu0 0
    %557 = vmatmul.mubr.bf16.gmra.mrb[0].mxu0 %v522
    %v558 = vpop.f32.mrb[0].mxu0
    %v559 = vadd.f32 %v135, %v558
    %v560 = vpop.f32.mrb[0].mxu0
    %v561 = vpop.f32.mrb[0].mxu0
    %v562 = vpop.f32.mrb[0].mxu0
    %563 = vdwg.mxu0
    %v564 = vadd.f32 %v512, %v559
    %v565 = vxor.u32 %v564, 2147483648
    %v566 = vmul.f32 %v565, 1.442695
    %v567 = vpow.pop %v566
    %v568 = vadd.f32 %v567, 1.0
    %v569 = vrcp.pop %v568
    %v570 = vmul.f32 1.0, %v569
    %572 = vrot.lane.b32.xlu0 %v559, 64
    %v573 = vpop.permute.xlu0 %572
    %v575 = vmul.f32 %v570, %v573
    %577 = vrot.lane.b32.xlu0 %v575, 64
    %v578 = vpop.permute.xlu0 %577
    %v580 = vadd.f32 %v512, %v578
    %v581 = vtanh.pop %v580
    %v582 = vsub.f32 1.0, %v570
    %584 = vrot.lane.b32.xlu0 %v581, 96
    %v585 = vpop.permute.xlu0 %584
    %v587 = vmul.f32 %v582, %v585
    %v588 = vmul.f32 %v570, %v465
    %v589 = vadd.f32 %v587, %v588
    %591 = vrot.lane.b32.xlu0 %v589, 96
    %v592 = vpop.permute.xlu0 %591
    %s594 = scalar_lea.vmem [#allocation8], 24
    %595 = vst.msk [vmem:[%s594] sm:$0xff] %vm149, %v592
    %s596 = scalar_lea.vmem [#allocation2], 16
    %v597 = vld [vmem:[%s596] sm:$0xf]
    %v599 = vsel %vm87, %v597, 0
    %601 = vmatprep.subr.bf16.mxu0 0
    %602 = vmatpush1.bf16.msra.mxu0 %v85
    %603 = vmatprep.subr.bf16.mxu0 0
    %604 = vmatpush1.bf16.msra.mxu0 0
    %605 = vmatprep.subr.bf16.mxu0 0
    %606 = vmatpush1.bf16.msra.mxu0 0
    %607 = vmatprep.subr.bf16.mxu0 0
    %608 = vmatpush1.bf16.msra.mxu0 0
    %609 = vmatprep.subr.bf16.mxu0 0
    %610 = vmatpush1.bf16.msra.mxu0 0
    %611 = vmatprep.subr.bf16.mxu0 0
    %612 = vmatpush1.bf16.msra.mxu0 0
    %613 = vmatprep.subr.bf16.mxu0 0
    %614 = vmatpush1.bf16.msra.mxu0 0
    %615 = vmatprep.subr.bf16.mxu0 0
    %616 = vmatpush1.bf16.msra.mxu0 0
    %617 = vmatprep.subr.bf16.mxu0 0
    %618 = vmatpush1.bf16.msra.mxu0 0
    %619 = vmatprep.subr.bf16.mxu0 0
    %620 = vmatpush1.bf16.msra.mxu0 0
    %621 = vmatprep.subr.bf16.mxu0 0
    %622 = vmatpush1.bf16.msra.mxu0 0
    %623 = vmatprep.subr.bf16.mxu0 0
    %624 = vmatpush1.bf16.msra.mxu0 0
    %625 = vmatprep.subr.bf16.mxu0 0
    %626 = vmatpush1.bf16.msra.mxu0 0
    %627 = vmatprep.subr.bf16.mxu0 0
    %628 = vmatpush1.bf16.msra.mxu0 0
    %629 = vmatprep.subr.bf16.mxu0 0
    %630 = vmatpush1.bf16.msra.mxu0 0
    %631 = vmatprep.subr.bf16.mxu0 0
    %632 = vmatpush1.bf16.msra.mxu0 0
    %633 = vmatprep.mubr.bf16.mxu0 0
    %634 = vmatmul.mubr.bf16.gmra.mrb[0].mxu0 %v599
    %v635 = vpop.f32.mrb[0].mxu0
    %v636 = vadd.f32 %v79, %v635
    %v637 = vpop.f32.mrb[0].mxu0
    %v638 = vpop.f32.mrb[0].mxu0
    %v639 = vpop.f32.mrb[0].mxu0
    %640 = vdwg.mxu0
    %v641 = vpack.c.bf16 %v589, %v589
    %643 = vrot.lane.b32.xlu0 %v641, 96
    %v644 = vpop.permute.xlu0 %643
    %v646 = vsel %vm149, %v644, 0
    %648 = vmatprep.subr.bf16.mxu0 0
    %649 = vmatpush1.bf16.msra.mxu0 %v145
    %650 = vmatprep.subr.bf16.mxu0 0
    %651 = vmatpush1.bf16.msra.mxu0 %v146
    %652 = vmatprep.subr.bf16.mxu0 0
    %653 = vmatpush1.bf16.msra.mxu0 0
    %654 = vmatprep.subr.bf16.mxu0 0
    %655 = vmatpush1.bf16.msra.mxu0 0
    %656 = vmatprep.subr.bf16.mxu0 0
    %657 = vmatpush1.bf16.msra.mxu0 0
    %658 = vmatprep.subr.bf16.mxu0 0
    %659 = vmatpush1.bf16.msra.mxu0 0
    %660 = vmatprep.subr.bf16.mxu0 0
    %661 = vmatpush1.bf16.msra.mxu0 0
    %662 = vmatprep.subr.bf16.mxu0 0
    %663 = vmatpush1.bf16.msra.mxu0 0
    %664 = vmatprep.subr.bf16.mxu0 0
    %665 = vmatpush1.bf16.msra.mxu0 0
    %666 = vmatprep.subr.bf16.mxu0 0
    %667 = vmatpush1.bf16.msra.mxu0 0
    %668 = vmatprep.subr.bf16.mxu0 0
    %669 = vmatpush1.bf16.msra.mxu0 0
    %670 = vmatprep.subr.bf16.mxu0 0
    %671 = vmatpush1.bf16.msra.mxu0 0
    %672 = vmatprep.subr.bf16.mxu0 0
    %673 = vmatpush1.bf16.msra.mxu0 0
    %674 = vmatprep.subr.bf16.mxu0 0
    %675 = vmatpush1.bf16.msra.mxu0 0
    %676 = vmatprep.subr.bf16.mxu0 0
    %677 = vmatpush1.bf16.msra.mxu0 0
    %678 = vmatprep.subr.bf16.mxu0 0
    %679 = vmatpush1.bf16.msra.mxu0 0
    %680 = vmatprep.mubr.bf16.mxu0 0
    %681 = vmatmul.mubr.bf16.gmra.mrb[0].mxu0 %v646
    %v682 = vpop.f32.mrb[0].mxu0
    %v683 = vadd.f32 %v135, %v682
    %v684 = vpop.f32.mrb[0].mxu0
    %v685 = vpop.f32.mrb[0].mxu0
    %v686 = vpop.f32.mrb[0].mxu0
    %687 = vdwg.mxu0
    %v688 = vadd.f32 %v636, %v683
    %v689 = vxor.u32 %v688, 2147483648
    %v690 = vmul.f32 %v689, 1.442695
    %v691 = vpow.pop %v690
    %v692 = vadd.f32 %v691, 1.0
    %v693 = vrcp.pop %v692
    %v694 = vmul.f32 1.0, %v693
    %696 = vrot.lane.b32.xlu0 %v683, 64
    %v697 = vpop.permute.xlu0 %696
    %v699 = vmul.f32 %v694, %v697
    %701 = vrot.lane.b32.xlu0 %v699, 64
    %v702 = vpop.permute.xlu0 %701
    %v704 = vadd.f32 %v636, %v702
    %v705 = vtanh.pop %v704
    %v706 = vsub.f32 1.0, %v694
    %708 = vrot.lane.b32.xlu0 %v705, 96
    %v709 = vpop.permute.xlu0 %708
    %v711 = vmul.f32 %v706, %v709
    %v712 = vmul.f32 %v694, %v589
    %v713 = vadd.f32 %v711, %v712
    %715 = vrot.lane.b32.xlu0 %v713, 96
    %v716 = vpop.permute.xlu0 %715
    %s718 = scalar_lea.vmem [#allocation8], 32
    %719 = vst.msk [vmem:[%s718] sm:$0xff] %vm149, %v716
    %s720 = scalar_lea.vmem [#allocation2], 20
    %v721 = vld [vmem:[%s720] sm:$0xf]
    %v723 = vsel %vm87, %v721, 0
    %725 = vmatprep.subr.bf16.mxu0 0
    %726 = vmatpush1.bf16.msra.mxu0 %v85
    %727 = vmatprep.subr.bf16.mxu0 0
    %728 = vmatpush1.bf16.msra.mxu0 0
    %729 = vmatprep.subr.bf16.mxu0 0
    %730 = vmatpush1.bf16.msra.mxu0 0
    %731 = vmatprep.subr.bf16.mxu0 0
    %732 = vmatpush1.bf16.msra.mxu0 0
    %733 = vmatprep.subr.bf16.mxu0 0
    %734 = vmatpush1.bf16.msra.mxu0 0
    %735 = vmatprep.subr.bf16.mxu0 0
    %736 = vmatpush1.bf16.msra.mxu0 0
    %737 = vmatprep.subr.bf16.mxu0 0
    %738 = vmatpush1.bf16.msra.mxu0 0
    %739 = vmatprep.subr.bf16.mxu0 0
    %740 = vmatpush1.bf16.msra.mxu0 0
    %741 = vmatprep.subr.bf16.mxu0 0
    %742 = vmatpush1.bf16.msra.mxu0 0
    %743 = vmatprep.subr.bf16.mxu0 0
    %744 = vmatpush1.bf16.msra.mxu0 0
    %745 = vmatprep.subr.bf16.mxu0 0
    %746 = vmatpush1.bf16.msra.mxu0 0
    %747 = vmatprep.subr.bf16.mxu0 0
    %748 = vmatpush1.bf16.msra.mxu0 0
    %749 = vmatprep.subr.bf16.mxu0 0
    %750 = vmatpush1.bf16.msra.mxu0 0
    %751 = vmatprep.subr.bf16.mxu0 0
    %752 = vmatpush1.bf16.msra.mxu0 0
    %753 = vmatprep.subr.bf16.mxu0 0
    %754 = vmatpush1.bf16.msra.mxu0 0
    %755 = vmatprep.subr.bf16.mxu0 0
    %756 = vmatpush1.bf16.msra.mxu0 0
    %757 = vmatprep.mubr.bf16.mxu0 0
    %758 = vmatmul.mubr.bf16.gmra.mrb[0].mxu0 %v723
    %v759 = vpop.f32.mrb[0].mxu0
    %v760 = vadd.f32 %v79, %v759
    %v761 = vpop.f32.mrb[0].mxu0
    %v762 = vpop.f32.mrb[0].mxu0
    %v763 = vpop.f32.mrb[0].mxu0
    %764 = vdwg.mxu0
    %v765 = vpack.c.bf16 %v713, %v713
    %767 = vrot.lane.b32.xlu0 %v765, 96
    %v768 = vpop.permute.xlu0 %767
    %v770 = vsel %vm149, %v768, 0
    %772 = vmatprep.subr.bf16.mxu0 0
    %773 = vmatpush1.bf16.msra.mxu0 %v145
    %774 = vmatprep.subr.bf16.mxu0 0
    %775 = vmatpush1.bf16.msra.mxu0 %v146
    %776 = vmatprep.subr.bf16.mxu0 0
    %777 = vmatpush1.bf16.msra.mxu0 0
    %778 = vmatprep.subr.bf16.mxu0 0
    %779 = vmatpush1.bf16.msra.mxu0 0
    %780 = vmatprep.subr.bf16.mxu0 0
    %781 = vmatpush1.bf16.msra.mxu0 0
    %782 = vmatprep.subr.bf16.mxu0 0
    %783 = vmatpush1.bf16.msra.mxu0 0
    %784 = vmatprep.subr.bf16.mxu0 0
    %785 = vmatpush1.bf16.msra.mxu0 0
    %786 = vmatprep.subr.bf16.mxu0 0
    %787 = vmatpush1.bf16.msra.mxu0 0
    %788 = vmatprep.subr.bf16.mxu0 0
    %789 = vmatpush1.bf16.msra.mxu0 0
    %790 = vmatprep.subr.bf16.mxu0 0
    %791 = vmatpush1.bf16.msra.mxu0 0
    %792 = vmatprep.subr.bf16.mxu0 0
    %793 = vmatpush1.bf16.msra.mxu0 0
    %794 = vmatprep.subr.bf16.mxu0 0
    %795 = vmatpush1.bf16.msra.mxu0 0
    %796 = vmatprep.subr.bf16.mxu0 0
    %797 = vmatpush1.bf16.msra.mxu0 0
    %798 = vmatprep.subr.bf16.mxu0 0
    %799 = vmatpush1.bf16.msra.mxu0 0
    %800 = vmatprep.subr.bf16.mxu0 0
    %801 = vmatpush1.bf16.msra.mxu0 0
    %802 = vmatprep.subr.bf16.mxu0 0
    %803 = vmatpush1.bf16.msra.mxu0 0
    %804 = vmatprep.mubr.bf16.mxu0 0
    %805 = vmatmul.mubr.bf16.gmra.mrb[0].mxu0 %v770
    %v806 = vpop.f32.mrb[0].mxu0
    %v807 = vadd.f32 %v135, %v806
    %v808 = vpop.f32.mrb[0].mxu0
    %v809 = vpop.f32.mrb[0].mxu0
    %v810 = vpop.f32.mrb[0].mxu0
    %811 = vdwg.mxu0
    %v812 = vadd.f32 %v760, %v807
    %v813 = vxor.u32 %v812, 2147483648
    %v814 = vmul.f32 %v813, 1.442695
    %v815 = vpow.pop %v814
    %v816 = vadd.f32 %v815, 1.0
    %v817 = vrcp.pop %v816
    %v818 = vmul.f32 1.0, %v817
    %820 = vrot.lane.b32.xlu0 %v807, 64
    %v821 = vpop.permute.xlu0 %820
    %v823 = vmul.f32 %v818, %v821
    %825 = vrot.lane.b32.xlu0 %v823, 64
    %v826 = vpop.permute.xlu0 %825
    %v828 = vadd.f32 %v760, %v826
    %v829 = vtanh.pop %v828
    %v830 = vsub.f32 1.0, %v818
    %832 = vrot.lane.b32.xlu0 %v829, 96
    %v833 = vpop.permute.xlu0 %832
    %v835 = vmul.f32 %v830, %v833
    %v836 = vmul.f32 %v818, %v713
    %v837 = vadd.f32 %v835, %v836
    %839 = vrot.lane.b32.xlu0 %v837, 96
    %v840 = vpop.permute.xlu0 %839
    %s842 = scalar_lea.vmem [#allocation8], 40
    %843 = vst.msk [vmem:[%s842] sm:$0xff] %vm149, %v840
    %s844 = scalar_lea.vmem [#allocation2], 24
    %v845 = vld [vmem:[%s844] sm:$0xf]
    %v847 = vsel %vm87, %v845, 0
    %849 = vmatprep.subr.bf16.mxu0 0
    %850 = vmatpush1.bf16.msra.mxu0 %v85
    %851 = vmatprep.subr.bf16.mxu0 0
    %852 = vmatpush1.bf16.msra.mxu0 0
    %853 = vmatprep.subr.bf16.mxu0 0
    %854 = vmatpush1.bf16.msra.mxu0 0
    %855 = vmatprep.subr.bf16.mxu0 0
    %856 = vmatpush1.bf16.msra.mxu0 0
    %857 = vmatprep.subr.bf16.mxu0 0
    %858 = vmatpush1.bf16.msra.mxu0 0
    %859 = vmatprep.subr.bf16.mxu0 0
    %860 = vmatpush1.bf16.msra.mxu0 0
    %861 = vmatprep.subr.bf16.mxu0 0
    %862 = vmatpush1.bf16.msra.mxu0 0
    %863 = vmatprep.subr.bf16.mxu0 0
    %864 = vmatpush1.bf16.msra.mxu0 0
    %865 = vmatprep.subr.bf16.mxu0 0
    %866 = vmatpush1.bf16.msra.mxu0 0
    %867 = vmatprep.subr.bf16.mxu0 0
    %868 = vmatpush1.bf16.msra.mxu0 0
    %869 = vmatprep.subr.bf16.mxu0 0
    %870 = vmatpush1.bf16.msra.mxu0 0
    %871 = vmatprep.subr.bf16.mxu0 0
    %872 = vmatpush1.bf16.msra.mxu0 0
    %873 = vmatprep.subr.bf16.mxu0 0
    %874 = vmatpush1.bf16.msra.mxu0 0
    %875 = vmatprep.subr.bf16.mxu0 0
    %876 = vmatpush1.bf16.msra.mxu0 0
    %877 = vmatprep.subr.bf16.mxu0 0
    %878 = vmatpush1.bf16.msra.mxu0 0
    %879 = vmatprep.subr.bf16.mxu0 0
    %880 = vmatpush1.bf16.msra.mxu0 0
    %881 = vmatprep.mubr.bf16.mxu0 0
    %882 = vmatmul.mubr.bf16.gmra.mrb[0].mxu0 %v847
    %v883 = vpop.f32.mrb[0].mxu0
    %v884 = vadd.f32 %v79, %v883
    %v885 = vpop.f32.mrb[0].mxu0
    %v886 = vpop.f32.mrb[0].mxu0
    %v887 = vpop.f32.mrb[0].mxu0
    %888 = vdwg.mxu0
    %v889 = vpack.c.bf16 %v837, %v837
    %891 = vrot.lane.b32.xlu0 %v889, 96
    %v892 = vpop.permute.xlu0 %891
    %v894 = vsel %vm149, %v892, 0
    %896 = vmatprep.subr.bf16.mxu0 0
    %897 = vmatpush1.bf16.msra.mxu0 %v145
    %898 = vmatprep.subr.bf16.mxu0 0
    %899 = vmatpush1.bf16.msra.mxu0 %v146
    %900 = vmatprep.subr.bf16.mxu0 0
    %901 = vmatpush1.bf16.msra.mxu0 0
    %902 = vmatprep.subr.bf16.mxu0 0
    %903 = vmatpush1.bf16.msra.mxu0 0
    %904 = vmatprep.subr.bf16.mxu0 0
    %905 = vmatpush1.bf16.msra.mxu0 0
    %906 = vmatprep.subr.bf16.mxu0 0
    %907 = vmatpush1.bf16.msra.mxu0 0
    %908 = vmatprep.subr.bf16.mxu0 0
    %909 = vmatpush1.bf16.msra.mxu0 0
    %910 = vmatprep.subr.bf16.mxu0 0
    %911 = vmatpush1.bf16.msra.mxu0 0
    %912 = vmatprep.subr.bf16.mxu0 0
    %913 = vmatpush1.bf16.msra.mxu0 0
    %914 = vmatprep.subr.bf16.mxu0 0
    %915 = vmatpush1.bf16.msra.mxu0 0
    %916 = vmatprep.subr.bf16.mxu0 0
    %917 = vmatpush1.bf16.msra.mxu0 0
    %918 = vmatprep.subr.bf16.mxu0 0
    %919 = vmatpush1.bf16.msra.mxu0 0
    %920 = vmatprep.subr.bf16.mxu0 0
    %921 = vmatpush1.bf16.msra.mxu0 0
    %922 = vmatprep.subr.bf16.mxu0 0
    %923 = vmatpush1.bf16.msra.mxu0 0
    %924 = vmatprep.subr.bf16.mxu0 0
    %925 = vmatpush1.bf16.msra.mxu0 0
    %926 = vmatprep.subr.bf16.mxu0 0
    %927 = vmatpush1.bf16.msra.mxu0 0
    %928 = vmatprep.mubr.bf16.mxu0 0
    %929 = vmatmul.mubr.bf16.gmra.mrb[0].mxu0 %v894
    %v930 = vpop.f32.mrb[0].mxu0
    %v931 = vadd.f32 %v135, %v930
    %v932 = vpop.f32.mrb[0].mxu0
    %v933 = vpop.f32.mrb[0].mxu0
    %v934 = vpop.f32.mrb[0].mxu0
    %935 = vdwg.mxu0
    %v936 = vadd.f32 %v884, %v931
    %v937 = vxor.u32 %v936, 2147483648
    %v938 = vmul.f32 %v937, 1.442695
    %v939 = vpow.pop %v938
    %v940 = vadd.f32 %v939, 1.0
    %v941 = vrcp.pop %v940
    %v942 = vmul.f32 1.0, %v941
    %944 = vrot.lane.b32.xlu0 %v931, 64
    %v945 = vpop.permute.xlu0 %944
    %v947 = vmul.f32 %v942, %v945
    %949 = vrot.lane.b32.xlu0 %v947, 64
    %v950 = vpop.permute.xlu0 %949
    %v952 = vadd.f32 %v884, %v950
    %v953 = vtanh.pop %v952
    %v954 = vsub.f32 1.0, %v942
    %956 = vrot.lane.b32.xlu0 %v953, 96
    %v957 = vpop.permute.xlu0 %956
    %v959 = vmul.f32 %v954, %v957
    %v960 = vmul.f32 %v942, %v837
    %v961 = vadd.f32 %v959, %v960
    %963 = vrot.lane.b32.xlu0 %v961, 96
    %v964 = vpop.permute.xlu0 %963
    %s966 = scalar_lea.vmem [#allocation8], 48
    %967 = vst.msk [vmem:[%s966] sm:$0xff] %vm149, %v964
    %s968 = scalar_lea.vmem [#allocation2], 28
    %v969 = vld [vmem:[%s968] sm:$0xf]
    %v971 = vsel %vm87, %v969, 0
    %973 = vmatprep.subr.bf16.mxu0 0
    %974 = vmatpush1.bf16.msra.mxu0 %v85
    %975 = vmatprep.subr.bf16.mxu0 0
    %976 = vmatpush1.bf16.msra.mxu0 0
    %977 = vmatprep.subr.bf16.mxu0 0
    %978 = vmatpush1.bf16.msra.mxu0 0
    %979 = vmatprep.subr.bf16.mxu0 0
    %980 = vmatpush1.bf16.msra.mxu0 0
    %981 = vmatprep.subr.bf16.mxu0 0
    %982 = vmatpush1.bf16.msra.mxu0 0
    %983 = vmatprep.subr.bf16.mxu0 0
    %984 = vmatpush1.bf16.msra.mxu0 0
    %985 = vmatprep.subr.bf16.mxu0 0
    %986 = vmatpush1.bf16.msra.mxu0 0
    %987 = vmatprep.subr.bf16.mxu0 0
    %988 = vmatpush1.bf16.msra.mxu0 0
    %989 = vmatprep.subr.bf16.mxu0 0
    %990 = vmatpush1.bf16.msra.mxu0 0
    %991 = vmatprep.subr.bf16.mxu0 0
    %992 = vmatpush1.bf16.msra.mxu0 0
    %993 = vmatprep.subr.bf16.mxu0 0
    %994 = vmatpush1.bf16.msra.mxu0 0
    %995 = vmatprep.subr.bf16.mxu0 0
    %996 = vmatpush1.bf16.msra.mxu0 0
    %997 = vmatprep.subr.bf16.mxu0 0
    %998 = vmatpush1.bf16.msra.mxu0 0
    %999 = vmatprep.subr.bf16.mxu0 0
    %1000 = vmatpush1.bf16.msra.mxu0 0
    %1001 = vmatprep.subr.bf16.mxu0 0
    %1002 = vmatpush1.bf16.msra.mxu0 0
    %1003 = vmatprep.subr.bf16.mxu0 0
    %1004 = vmatpush1.bf16.msra.mxu0 0
    %1005 = vmatprep.mubr.bf16.mxu0 0
    %1006 = vmatmul.mubr.bf16.gmra.mrb[0].mxu0 %v971
    %v1007 = vpop.f32.mrb[0].mxu0
    %v1008 = vadd.f32 %v79, %v1007
    %v1009 = vpop.f32.mrb[0].mxu0
    %v1010 = vpop.f32.mrb[0].mxu0
    %v1011 = vpop.f32.mrb[0].mxu0
    %1012 = vdwg.mxu0
    %v1013 = vpack.c.bf16 %v961, %v961
    %1015 = vrot.lane.b32.xlu0 %v1013, 96
    %v1016 = vpop.permute.xlu0 %1015
    %v1018 = vsel %vm149, %v1016, 0
    %1020 = vmatprep.subr.bf16.mxu0 0
    %1021 = vmatpush1.bf16.msra.mxu0 %v145
    %1022 = vmatprep.subr.bf16.mxu0 0
    %1023 = vmatpush1.bf16.msra.mxu0 %v146
    %1024 = vmatprep.subr.bf16.mxu0 0
    %1025 = vmatpush1.bf16.msra.mxu0 0
    %1026 = vmatprep.subr.bf16.mxu0 0
    %1027 = vmatpush1.bf16.msra.mxu0 0
    %1028 = vmatprep.subr.bf16.mxu0 0
    %1029 = vmatpush1.bf16.msra.mxu0 0
    %1030 = vmatprep.subr.bf16.mxu0 0
    %1031 = vmatpush1.bf16.msra.mxu0 0
    %1032 = vmatprep.subr.bf16.mxu0 0
    %1033 = vmatpush1.bf16.msra.mxu0 0
    %1034 = vmatprep.subr.bf16.mxu0 0
    %1035 = vmatpush1.bf16.msra.mxu0 0
    %1036 = vmatprep.subr.bf16.mxu0 0
    %1037 = vmatpush1.bf16.msra.mxu0 0
    %1038 = vmatprep.subr.bf16.mxu0 0
    %1039 = vmatpush1.bf16.msra.mxu0 0
    %1040 = vmatprep.subr.bf16.mxu0 0
    %1041 = vmatpush1.bf16.msra.mxu0 0
    %1042 = vmatprep.subr.bf16.mxu0 0
    %1043 = vmatpush1.bf16.msra.mxu0 0
    %1044 = vmatprep.subr.bf16.mxu0 0
    %1045 = vmatpush1.bf16.msra.mxu0 0
    %1046 = vmatprep.subr.bf16.mxu0 0
    %1047 = vmatpush1.bf16.msra.mxu0 0
    %1048 = vmatprep.subr.bf16.mxu0 0
    %1049 = vmatpush1.bf16.msra.mxu0 0
    %1050 = vmatprep.subr.bf16.mxu0 0
    %1051 = vmatpush1.bf16.msra.mxu0 0
    %1052 = vmatprep.mubr.bf16.mxu0 0
    %1053 = vmatmul.mubr.bf16.gmra.mrb[0].mxu0 %v1018
    %v1054 = vpop.f32.mrb[0].mxu0
    %v1055 = vadd.f32 %v135, %v1054
    %v1056 = vpop.f32.mrb[0].mxu0
    %v1057 = vpop.f32.mrb[0].mxu0
    %v1058 = vpop.f32.mrb[0].mxu0
    %1059 = vdwg.mxu0
    %v1060 = vadd.f32 %v1008, %v1055
    %v1061 = vxor.u32 %v1060, 2147483648
    %v1062 = vmul.f32 %v1061, 1.442695
    %v1063 = vpow.pop %v1062
    %v1064 = vadd.f32 %v1063, 1.0
    %v1065 = vrcp.pop %v1064
    %v1066 = vmul.f32 1.0, %v1065
    %1068 = vrot.lane.b32.xlu0 %v1055, 64
    %v1069 = vpop.permute.xlu0 %1068
    %v1071 = vmul.f32 %v1066, %v1069
    %1073 = vrot.lane.b32.xlu0 %v1071, 64
    %v1074 = vpop.permute.xlu0 %1073
    %v1076 = vadd.f32 %v1008, %v1074
    %v1077 = vtanh.pop %v1076
    %v1078 = vsub.f32 1.0, %v1066
    %1080 = vrot.lane.b32.xlu0 %v1077, 96
    %v1081 = vpop.permute.xlu0 %1080
    %v1083 = vmul.f32 %v1078, %v1081
    %v1084 = vmul.f32 %v1066, %v961
    %v1085 = vadd.f32 %v1083, %v1084
    %1087 = vrot.lane.b32.xlu0 %v1085, 96
    %v1088 = vpop.permute.xlu0 %1087
    %s1090 = scalar_lea.vmem [#allocation8], 56
    %1091 = vst.msk [vmem:[%s1090] sm:$0xff] %vm149, %v1088
    %1092 = vst.msk [vmem:[#allocation9] sm:$0xff] %vm149, %v1088
    // Predicated region
    $region34: #{tpu_custom_call.1} parent=1 // pred_check
      _
    $region35: #{tpu_custom_call.1} parent=1 // pred_check_branch
      %1094 = sbr.rel (0) target = $region37
    $region36: #{tpu_custom_call.1} parent=1 // pred_region
      %s1096 = ssub.s32 1024, 1024
      %1097 = vsyncadd [#allocation4], %s1096
      %s1098 = sshll.u32 [#allocation8], 4
      %s1099 = int_to_ptr.vmem [resolvable:$true] %s1098
      %1104 = dma.vmem_to_hbm [thread:$0]  %s1099, 1024, %s5, [#allocation4], 128, 128, 8
    $region37: #{tpu_custom_call.1} parent=1 // pred_fallthru
      _
    // Predicated region
    $region38: #{tpu_custom_call.1} parent=1 // pred_check
      _
    $region39: #{tpu_custom_call.1} parent=1 // pred_check_branch
      %1106 = sbr.rel (0) target = $region41
    $region40: #{tpu_custom_call.1} parent=1 // pred_region
      %s1108 = ssub.s32 128, 128
      %1109 = vsyncadd [#allocation10], %s1108
      %s1111 = sshll.u32 [#allocation9], 4
      %s1112 = int_to_ptr.vmem [resolvable:$true] %s1111
      %1114 = dma.vmem_to_hbm [thread:$0]  %s1112, 128, %s6, [#allocation10]
    $region41: #{tpu_custom_call.1} parent=1 // pred_fallthru
      _
    // Predicated region
    $region42: #{tpu_custom_call.1} parent=1 // pred_check
      _
    $region43: #{tpu_custom_call.1} parent=1 // pred_check_branch
      %1116 = sbr.rel (0) target = $region45
    $region44: #{tpu_custom_call.1} parent=1 // pred_region
      %1117 = dma.done [#allocation4], 1024
    $region45: #{tpu_custom_call.1} parent=1 // pred_fallthru
      _
    // Predicated region
    $region46: #{tpu_custom_call.1} parent=1 // pred_check
      _
    $region47: #{tpu_custom_call.1} parent=1 // pred_check_branch
      %1119 = sbr.rel (0) target = $region49
    $region48: #{tpu_custom_call.1} parent=1 // pred_region
      %1120 = dma.done [#allocation10], 128
    $region49: #{tpu_custom_call.1} parent=1 // pred_fallthru
      _
    %1121 = vsyncpa [#allocation3], 1
    %1122 = vsyncpa [#allocation6], 1
    %1123 = vsyncpa [#allocation4], 1
    %1124 = vsyncpa [#allocation10], 1

</llo_original>
